<compile_context>
chip_gen: v7x
topology: tpu7x:2x2x1
jax: 0.10.0
libtpu: 0.0.40
codegen_flags: <defaults>
</compile_context>

<pallas_src>
import functools

import jax
import jax.numpy as jnp
from jax import lax
from jax.experimental import pallas as pl
from jax.experimental.pallas import tpu as pltpu

TM_MAX, TN_MAX, TK_MAX = 512, 512, 512     # fused_matmul tile upper bounds
TQ_MAX = 512                               # conv3x3 flattened-row tile
FUSE_KW_MAX_CIN = 128                      # kw-fuse taps along K when cin_p <= this
VMEM_LIMIT = 32 * 1024 * 1024              # v7x-safe scoped-VMEM budget


def _round_up(n, m):
    return ((n + m - 1) // m) * m


def _cdiv(a, b):
    return (a + b - 1) // b


def _apply_act(x, activation):
    if activation == "relu":
        return jnp.maximum(x, 0.0)
    if activation == "sigmoid":
        return jax.nn.sigmoid(x)
    return x


# ---------------------------------------------------------------------------
# Generic fused matmul:  out = act((A @ B) + shift [+ residual])
# (BN scale / bias are folded into B / shift on the host.)
# ---------------------------------------------------------------------------
def _matmul_kernel(a_ref, b_ref, shift_ref, o_ref, acc_ref, *, activation):
    k = pl.program_id(2)

    @pl.when(k == 0)
    def _():
        acc_ref[...] = jnp.zeros_like(acc_ref)

    acc_ref[...] += jnp.dot(a_ref[...], b_ref[...],
                            preferred_element_type=jnp.float32)

    @pl.when(k == pl.num_programs(2) - 1)
    def _():
        out = _apply_act(acc_ref[...] + shift_ref[...], activation)
        o_ref[...] = out.astype(o_ref.dtype)


def _matmul_res_kernel(a_ref, b_ref, shift_ref, res_ref, o_ref, acc_ref, *,
                       activation):
    k = pl.program_id(2)

    @pl.when(k == 0)
    def _():
        acc_ref[...] = jnp.zeros_like(acc_ref)

    acc_ref[...] += jnp.dot(a_ref[...], b_ref[...],
                            preferred_element_type=jnp.float32)

    @pl.when(k == pl.num_programs(2) - 1)
    def _():
        out = acc_ref[...] + shift_ref[...] + res_ref[...].astype(jnp.float32)
        o_ref[...] = _apply_act(out, activation).astype(o_ref.dtype)


def fused_matmul(a, b, shift, residual=None, activation="none",
                 out_dtype=jnp.bfloat16):
    """act((a @ b) + shift [+ residual]); a:(M,K), b:(K,N). bf16 MXU, f32 acc."""
    M, K = a.shape
    K2, Ncols = b.shape
    assert K == K2
    tm = min(TM_MAX, _round_up(M, 16))          # 16: bf16 sublane packing
    tn = min(TN_MAX, _round_up(Ncols, 128))
    tk = min(TK_MAX, _round_up(K, 128))
    Mp, Kp, Np = _round_up(M, tm), _round_up(K, tk), _round_up(Ncols, tn)

    a_p = jnp.pad(a.astype(jnp.bfloat16), ((0, Mp - M), (0, Kp - K)))
    b_p = jnp.pad(b.astype(jnp.bfloat16), ((0, Kp - K), (0, Np - Ncols)))
    shift_p = jnp.pad(shift.astype(jnp.float32), (0, Np - Ncols)).reshape(1, Np)

    operands = [a_p, b_p, shift_p]
    in_specs = [
        pl.BlockSpec((tm, tk), lambda i, j, k: (i, k)),
        pl.BlockSpec((tk, tn), lambda i, j, k: (k, j)),
        pl.BlockSpec((1, tn), lambda i, j, k: (0, j)),
    ]
    if residual is None:
        kernel = functools.partial(_matmul_kernel, activation=activation)
    else:
        res_p = jnp.pad(residual.astype(jnp.bfloat16),
                        ((0, Mp - M), (0, Np - Ncols)))
        operands.append(res_p)
        in_specs.append(pl.BlockSpec((tm, tn), lambda i, j, k: (i, j)))
        kernel = functools.partial(_matmul_res_kernel, activation=activation)

    out = pl.pallas_call(
        kernel,
        out_shape=jax.ShapeDtypeStruct((Mp, Np), out_dtype),
        grid_spec=pltpu.PrefetchScalarGridSpec(
            num_scalar_prefetch=0,
            grid=(Mp // tm, Np // tn, Kp // tk),
            in_specs=in_specs,
            out_specs=pl.BlockSpec((tm, tn), lambda i, j, k: (i, j)),
            scratch_shapes=[pltpu.VMEM((tm, tn), jnp.float32)],
        ),
        compiler_params=pltpu.CompilerParams(
            dimension_semantics=("parallel", "parallel", "arbitrary"),
            vmem_limit_bytes=VMEM_LIMIT),
    )(*operands)
    return out[:M, :Ncols]


# ---------------------------------------------------------------------------
# Stride-1 3x3 conv (padding=1), multi-input (concat-free), row-tiled grid.
# Each image is flattened over the padded (H_tot, Wp) grid with Wp a multiple of
# 8, so tap (kh, kw) of output row p lives at flat row p + kh*Wp + kw.
# ---------------------------------------------------------------------------
def _conv3x3_kernel(*refs, n_inputs, cins, fuse, tq, wp, activation):
    x_refs = refs[:n_inputs]
    w_refs = refs[n_inputs:2 * n_inputs]
    shift_ref = refs[2 * n_inputs]
    o_ref = refs[2 * n_inputs + 1]
    acc_ref = refs[2 * n_inputs + 2]
    a3_refs = refs[2 * n_inputs + 3:]

    row0 = pl.multiple_of(pl.program_id(2) * tq, 8)
    acc_ref[...] = jnp.zeros_like(acc_ref)

    fi = 0
    for j in range(n_inputs):
        cin = cins[j]
        for kh in range(3):
            base = pl.multiple_of(row0 + kh * wp, 8)
            xa = x_refs[j][pl.ds(base, tq + 8), :]      # one aligned halo load
            if fuse[j]:
                # Fuse the 3 kw taps along K: (tq, 3*cin) @ (3*cin, tco).
                a3 = a3_refs[fi]
                for kw in range(3):
                    a3[:, kw * cin:(kw + 1) * cin] = xa[kw:kw + tq, :]
                wk = w_refs[j][kh * 3 * cin:(kh + 1) * 3 * cin, :]
                acc_ref[...] += jnp.dot(a3[...], wk,
                                        preferred_element_type=jnp.float32)
            else:
                for kw in range(3):
                    t = kh * 3 + kw
                    wk = w_refs[j][t * cin:(t + 1) * cin, :]
                    acc_ref[...] += jnp.dot(xa[kw:kw + tq, :], wk,
                                            preferred_element_type=jnp.float32)
        if fuse[j]:
            fi += 1

    out = _apply_act(acc_ref[...] + shift_ref[...], activation)
    o_ref[...] = out.astype(o_ref.dtype)


def conv3x3_s1(inputs, scale, shift, activation="relu",
               out_dtype=jnp.bfloat16):
    """Fused stride-1 3x3 conv (pad=1) + folded BN + activation.

    `inputs` is a list of (x, w_hwio_chunk) channel chunks; the op equals a conv
    over concat([x_j], -1) with weights concat([w_j], axis=2) — the concat is
    never materialized and the 3x3 window is formed inside the kernel.
    """
    N, H, W, _ = inputs[0][0].shape
    Cout = inputs[0][1].shape[-1]

    Wp = _round_up(W + 2, 8)                  # aligned flattened row stride
    Q = H * Wp                                # output rows (junk cols included)
    tq = min(TQ_MAX, _round_up(Q, 8))
    Qp = _round_up(Q, tq)
    H_tot = _cdiv(Qp + 2 * Wp + 8, Wp)        # every halo load stays in-bounds
    Rflat = H_tot * Wp

    if Cout <= 256:
        Cop, tco = _round_up(Cout, 8), _round_up(Cout, 8)
    else:
        Cop, tco = _round_up(Cout, 256), 256

    xs, ws, cins, fuse = [], [], [], []
    for x, w in inputs:
        cin = x.shape[-1]
        cin_p = _round_up(cin, 8)
        xp = jnp.pad(x.astype(jnp.bfloat16),
                     ((0, 0), (1, H_tot - H - 1), (1, Wp - W - 1),
                      (0, cin_p - cin)))
        xs.append(xp.reshape(N, Rflat, cin_p))
        wf = (w * scale[None, None, None, :]).astype(jnp.bfloat16)
        wf = jnp.pad(wf, ((0, 0), (0, 0), (0, cin_p - cin), (0, Cop - Cout)))
        ws.append(wf.reshape(9 * cin_p, Cop))
        cins.append(cin_p)
        fuse.append(cin_p <= FUSE_KW_MAX_CIN)

    shift2 = jnp.pad(shift.astype(jnp.float32), (0, Cop - Cout)).reshape(1, Cop)

    in_specs = (
        [pl.BlockSpec((None, Rflat, c), lambda co, n, r: (n, 0, 0)) for c in cins]
        + [pl.BlockSpec((9 * c, tco), lambda co, n, r: (0, co)) for c in cins]
        + [pl.BlockSpec((1, tco), lambda co, n, r: (0, co))])

    scratch = [pltpu.VMEM((tq, tco), jnp.float32)]
    scratch += [pltpu.VMEM((tq, 3 * c), jnp.bfloat16)
                for c, f in zip(cins, fuse) if f]

    kernel = functools.partial(_conv3x3_kernel, n_inputs=len(inputs),
                               cins=tuple(cins), fuse=tuple(fuse),
                               tq=tq, wp=Wp, activation=activation)

    out = pl.pallas_call(
        kernel,
        out_shape=jax.ShapeDtypeStruct((N, Qp, Cop), out_dtype),
        grid_spec=pltpu.PrefetchScalarGridSpec(
            num_scalar_prefetch=0,
            # cout chunks OUTERMOST -> weight blocks stay resident across (n, r).
            grid=(Cop // tco, N, Qp // tq),
            in_specs=in_specs,
            out_specs=pl.BlockSpec((None, tq, tco), lambda co, n, r: (n, r, co)),
            scratch_shapes=scratch,
        ),
        compiler_params=pltpu.CompilerParams(
            dimension_semantics=("parallel", "parallel", "arbitrary"),
            vmem_limit_bytes=VMEM_LIMIT),
    )(*xs, *ws, shift2)

    # TODO(synk): the pad/reshape in and slice out are extra XLA layout passes;
    # fusing producer outputs directly into the padded-flat layout would remove
    # them at the HBM-bound shallow stages.
    out = out[:, :Q, :Cout].reshape(N, H, Wp, Cout)[:, :, :W, :]
    return out


# ---------------------------------------------------------------------------
# Fused final head: ConvTranspose2d(k=2,s=2,bias=False) + BN + ReLU
#                   + Conv2d(1x1, out=1) + Sigmoid.  Pixels on lanes, output is
# a lane-dense (4, M) slab (one row per 2x2 sub-position); the ReLU'd
# intermediate stays in registers and the 1x1 conv is a VPU mul + sublane sum.
# ---------------------------------------------------------------------------
def _head_kernel(at_ref, bt_ref, shift_ref, w1_ref, b1_ref, o_ref, *, cup):
    ht = jnp.dot(bt_ref[...], at_ref[...],
                 preferred_element_type=jnp.float32)         # (4*cup, tm)
    ht = jnp.maximum(ht + shift_ref[...], 0.0)
    w1 = w1_ref[...]                                         # (cup, 1)
    rows = []
    for g in range(4):
        hg = ht[g * cup:(g + 1) * cup, :]                    # (cup, tm)
        rows.append(jnp.sum(hg * w1, axis=0, keepdims=True) + b1_ref[...])
    o_ref[...] = jax.nn.sigmoid(jnp.concatenate(rows, axis=0)).astype(o_ref.dtype)


def upsample_head(x, w_up, bn_scale, bn_shift, w1, b1, out_dtype=jnp.float32):
    N, H, W, Cin = x.shape
    Cup = w_up.shape[-1]
    oc = w1.shape[-1]
    if oc != 1:
        # General out_channels fallback (still fused Pallas matmuls).
        h = conv_transpose2x2(x, w_up, bn_scale, bn_shift, activation="relu")
        return conv1x1(h, w1, jnp.ones((oc,), jnp.float32), b1,
                       activation="sigmoid").astype(out_dtype)

    M = N * H * W
    NC = 4 * Cup
    Cin_p = _round_up(Cin, 8)
    tm = min(512, _round_up(M, 128))
    Mp = _round_up(M, tm)

    at = x.reshape(M, Cin).astype(jnp.bfloat16)
    at = jnp.pad(at, ((0, Mp - M), (0, Cin_p - Cin))).T              # (Cin_p, Mp)

    B = (w_up.reshape(Cin, 4, Cup) * bn_scale[None, None, :]).reshape(Cin, NC)
    bt = jnp.pad(B, ((0, Cin_p - Cin), (0, 0))).T.astype(jnp.bfloat16)  # (NC, Cin_p)
    shift_t = jnp.tile(bn_shift.astype(jnp.float32), 4).reshape(NC, 1)
    w1c = w1.astype(jnp.float32).reshape(Cup, 1)
    b1c = b1.astype(jnp.float32).reshape(1, 1)

    out = pl.pallas_call(
        functools.partial(_head_kernel, cup=Cup),
        out_shape=jax.ShapeDtypeStruct((4, Mp), out_dtype),
        grid_spec=pltpu.PrefetchScalarGridSpec(
            num_scalar_prefetch=0,
            grid=(Mp // tm,),
            in_specs=[
                pl.BlockSpec((Cin_p, tm), lambda i: (0, i)),
                pl.BlockSpec((NC, Cin_p), lambda i: (0, 0)),
                pl.BlockSpec((NC, 1), lambda i: (0, 0)),
                pl.BlockSpec((Cup, 1), lambda i: (0, 0)),
                pl.BlockSpec((1, 1), lambda i: (0, 0)),
            ],
            out_specs=pl.BlockSpec((4, tm), lambda i: (0, i)),
        ),
        compiler_params=pltpu.CompilerParams(
            dimension_semantics=("parallel",),
            vmem_limit_bytes=VMEM_LIMIT),
    )(at, bt, shift_t, w1c, b1c)

    out = out[:, :M].reshape(2, 2, N, H, W)
    out = out.transpose(2, 3, 0, 4, 1).reshape(N, 2 * H, 2 * W, 1)
    return out


# ---------------------------------------------------------------------------
# Layout-glue conv helpers (im2col only used for the tiny bottleneck maps)
# ---------------------------------------------------------------------------
def _im2col3x3(x, stride):
    N, H, W, C = x.shape
    xp = jnp.pad(x, ((0, 0), (1, 1), (1, 1), (0, 0)))
    Ho = (H + 2 - 3) // stride + 1
    Wo = (W + 2 - 3) // stride + 1
    cols = []
    for kh in range(3):
        for kw in range(3):
            cols.append(xp[:, kh:kh + stride * (Ho - 1) + 1:stride,
                           kw:kw + stride * (Wo - 1) + 1:stride, :])
    patches = jnp.stack(cols, axis=3)                      # (N,Ho,Wo,9,C)
    return patches.reshape(N * Ho * Wo, 9 * C), (N, Ho, Wo)


def conv3x3_im2col(x, w_hwio, scale, shift, stride=1, activation="relu",
                   residual=None):
    cin, cout = w_hwio.shape[2], w_hwio.shape[3]
    cols, (N, Ho, Wo) = _im2col3x3(x, stride)
    B = (w_hwio * scale[None, None, None, :]).reshape(9 * cin, cout)
    res = None if residual is None else residual.reshape(N * Ho * Wo, cout)
    out = fused_matmul(cols, B, shift, residual=res, activation=activation)
    return out.reshape(N, Ho, Wo, cout)


def conv1x1(x, w, scale, shift, stride=1, activation="none"):
    if stride > 1:
        x = x[:, ::stride, ::stride, :]
    N, H, W, C = x.shape
    cout = w.shape[-1]
    out = fused_matmul(x.reshape(N * H * W, C), w * scale[None, :], shift,
                       activation=activation)
    return out.reshape(N, H, W, cout)


def conv_transpose2x2(x, w, scale_c, shift_c, activation="none"):
    """ConvTranspose2d(k=2,s=2) + folded (scale, shift) + act.  w:(Cin,2,2,Cout)."""
    N, H, W, Cin = x.shape
    Cout = w.shape[-1]
    B = (w.reshape(Cin, 4, Cout) * scale_c[None, None, :]).reshape(Cin, 4 * Cout)
    out = fused_matmul(x.reshape(N * H * W, Cin), B,
                       jnp.tile(shift_c.astype(jnp.float32), 4),
                       activation=activation)
    out = out.reshape(N, H, W, 2, 2, Cout).transpose(0, 1, 3, 2, 4, 5)
    return out.reshape(N, 2 * H, 2 * W, Cout)


def bn_scale_shift(c, eps=1e-5):
    """Eval-mode BatchNorm2d with fresh-init running stats folded to (scale, shift)."""
    gamma = jnp.ones((c,), jnp.float32)
    beta = jnp.zeros((c,), jnp.float32)
    mean = jnp.zeros((c,), jnp.float32)
    var = jnp.ones((c,), jnp.float32)
    scale = gamma / jnp.sqrt(var + eps)
    shift = beta - mean * scale
    return scale, shift


# ---------------------------------------------------------------------------
# Parameter init (deterministic, synthetic) and forward pass
# ---------------------------------------------------------------------------
def init_params(key, feature_sizes, out_channels):
    keys = iter(jax.random.split(key, 64))

    def w(shape, fan_in):
        std = (2.0 / fan_in) ** 0.5
        return jax.random.normal(next(keys), shape, jnp.float32) * std

    def bias(shape):
        return jax.random.normal(next(keys), shape, jnp.float32) * 0.1

    f0 = feature_sizes[0]
    p = {
        "bn_conv1_w": w((3, 3, f0, 2 * f0), 9 * f0),        # 3x3 stride 2, no bias
        "bn_conv2_w": w((3, 3, 2 * f0, 2 * f0), 18 * f0),   # 3x3 stride 1, no bias
        "bn_sc_w": w((f0, 2 * f0), f0),                     # 1x1 shortcut, stride 2
        "ups": [],
    }
    for fs in feature_sizes:
        p["ups"].append({
            "up_w": w((2 * fs, 2, 2, fs), 2 * fs),          # ConvTranspose2d, bias=True
            "up_b": bias((fs,)),
            "cb_conv1_w": w((3, 3, 2 * fs, fs), 18 * fs),   # ConvBlock conv1
            "cb_conv2_w": w((3, 3, fs, fs), 9 * fs),        # ConvBlock conv2
        })
    fl = feature_sizes[-1]
    p["fin_up1_w"] = w((fl, 2, 2, fl), fl)                  # bias=False (BN follows)
    p["fin_up2_w"] = w((fl, 2, 2, fl), fl)                  # bias=False (BN follows)
    p["fin_conv_w"] = w((fl, out_channels), fl)             # 1x1 conv, bias=True
    p["fin_conv_b"] = bias((out_channels,))
    return p


def unet_decoder_forward(params, x_nchw, skips_nchw, feature_sizes):
    x = jnp.transpose(x_nchw, (0, 2, 3, 1)).astype(jnp.bfloat16)
    skips = [jnp.transpose(s, (0, 2, 3, 1)).astype(jnp.bfloat16)
             for s in skips_nchw]

    # ---- bottleneck: ResidualBlock(f0 -> 2*f0, downsample=True) + Dropout2d ----
    f0 = feature_sizes[0]
    s1, sh1 = bn_scale_shift(2 * f0)
    h = conv3x3_im2col(x, params["bn_conv1_w"], s1, sh1, stride=2,
                       activation="relu")
    ssc, shsc = bn_scale_shift(2 * f0)
    shortcut = conv1x1(x, params["bn_sc_w"], ssc, shsc, stride=2)
    s2, sh2 = bn_scale_shift(2 * f0)
    x = conv3x3_im2col(h, params["bn_conv2_w"], s2, sh2, stride=1,
                       activation="relu", residual=shortcut)
    # Dropout2d(p=0.1): identity in eval mode.

    # ---- upsampling path ----
    skips = skips[::-1]
    for i, fs in enumerate(feature_sizes):
        up = params["ups"][i]
        # ConvTranspose2d(2*fs -> fs, k=2, s=2) with bias
        x = conv_transpose2x2(x, up["up_w"], jnp.ones((fs,), jnp.float32),
                              up["up_b"])
        # ConvBlock(2*fs -> fs): conv1 consumes [x, skip] without the concat
        sa, sha = bn_scale_shift(fs)
        w1 = up["cb_conv1_w"]
        x = conv3x3_s1([(x, w1[:, :, :fs, :]), (skips[i], w1[:, :, fs:, :])],
                       sa, sha, activation="relu")
        sb, shb = bn_scale_shift(fs)
        x = conv3x3_s1([(x, up["cb_conv2_w"])], sb, shb, activation="relu")

    # ---- final head ----
    fl = feature_sizes[-1]
    s, sh = bn_scale_shift(fl)
    x = conv_transpose2x2(x, params["fin_up1_w"], s, sh, activation="relu")
    s, sh = bn_scale_shift(fl)
    out = upsample_head(x, params["fin_up2_w"], s, sh,
                        params["fin_conv_w"], params["fin_conv_b"])
    return jnp.transpose(out, (0, 3, 1, 2))


# ---------------------------------------------------------------------------
# Pure-JAX reference (f32) for a correctness guard
# ---------------------------------------------------------------------------
def _ref_conv3x3(x, w, stride=1):
    return lax.conv_general_dilated(
        x, w, window_strides=(stride, stride), padding=((1, 1), (1, 1)),
        dimension_numbers=("NHWC", "HWIO", "NHWC"))


def _ref_conv_transpose2x2(x, w, bias=None):
    N, H, W, _ = x.shape
    Cout = w.shape[-1]
    y = jnp.einsum("nhwc,cklo->nhkwlo", x, w).reshape(N, 2 * H, 2 * W, Cout)
    return y if bias is None else y + bias


def _ref_bn(x, c):
    scale, shift = bn_scale_shift(c)
    return x * scale + shift


def unet_decoder_reference(params, x_nchw, skips_nchw, feature_sizes):
    x = jnp.transpose(x_nchw, (0, 2, 3, 1)).astype(jnp.float32)
    skips = [jnp.transpose(s, (0, 2, 3, 1)).astype(jnp.float32)
             for s in skips_nchw]

    f0 = feature_sizes[0]
    h = jax.nn.relu(_ref_bn(_ref_conv3x3(x, params["bn_conv1_w"], 2), 2 * f0))
    sc = _ref_bn(jnp.einsum("nhwc,co->nhwo", x[:, ::2, ::2, :],
                            params["bn_sc_w"]), 2 * f0)
    x = jax.nn.relu(_ref_bn(_ref_conv3x3(h, params["bn_conv2_w"], 1), 2 * f0) + sc)

    skips = skips[::-1]
    for i, fs in enumerate(feature_sizes):
        up = params["ups"][i]
        x = _ref_conv_transpose2x2(x, up["up_w"], up["up_b"])
        x = jnp.concatenate([x, skips[i]], axis=-1)
        x = jax.nn.relu(_ref_bn(_ref_conv3x3(x, up["cb_conv1_w"]), fs))
        x = jax.nn.relu(_ref_bn(_ref_conv3x3(x, up["cb_conv2_w"]), fs))

    fl = feature_sizes[-1]
    x = jax.nn.relu(_ref_bn(_ref_conv_transpose2x2(x, params["fin_up1_w"]), fl))
    x = jax.nn.relu(_ref_bn(_ref_conv_transpose2x2(x, params["fin_up2_w"]), fl))
    x = jax.nn.sigmoid(jnp.einsum("nhwc,co->nhwo", x, params["fin_conv_w"])
                       + params["fin_conv_b"])
    return jnp.transpose(x, (0, 3, 1, 2))


if __name__ == "__main__":
    key = jax.random.PRNGKey(0)

    # --- mini correctness check of the large-cin (direct, non-kw-fused) path ---
    km1, km2, key = jax.random.split(key, 3)
    xt = jax.random.normal(km1, (1, 6, 6, 160), jnp.float32)
    wt = jax.random.normal(km2, (3, 3, 160, 32), jnp.float32) * 0.02
    sc1 = jnp.ones((32,), jnp.float32)
    sh1 = jnp.zeros((32,), jnp.float32)
    conv_fn = jax.jit(lambda xa, wa: conv3x3_s1([(xa, wa)], sc1, sh1,
                                                activation="none"))
    yk = jax.block_until_ready(conv_fn(xt, wt)).astype(jnp.float32)
    yr = _ref_conv3x3(xt, wt, stride=1)
    assert float(jnp.max(jnp.abs(yk - yr))) < 6e-2

    # --- full decoder forward (small, self-consistent shapes) ---
    feature_sizes = [32, 16, 8, 4]
    out_channels = 1
    N, H, W = 2, 4, 4

    kp, kx, k0, k1, k2, k3 = jax.random.split(key, 6)
    params = init_params(kp, feature_sizes, out_channels)

    # decoder input (deepest encoder feature map), NCHW
    x = jax.random.normal(kx, (N, feature_sizes[0], H, W), jnp.float32)

    # Skips are consumed reversed inside forward(); build them so that after the
    # reversal skip i has feature_sizes[i] channels and spatial H * 2^i.
    skip_keys = [k0, k1, k2, k3]
    rev_skips = []
    h = H
    for i, fs in enumerate(feature_sizes):
        rev_skips.append(jax.random.normal(skip_keys[i], (N, fs, h, h),
                                           jnp.float32))
        h *= 2
    skips = rev_skips[::-1]   # encoder order (shallow last), as the module expects

    fwd = jax.jit(functools.partial(unet_decoder_forward,
                                    feature_sizes=feature_sizes))
    out = jax.block_until_ready(fwd(params, x, skips))

    assert out.shape == (N, out_channels, H * 32, W * 32), out.shape
    assert bool(jnp.all(jnp.isfinite(out)))
    assert bool(jnp.all((out >= 0.0) & (out <= 1.0)))   # sigmoid output

    ref = unet_decoder_reference(params, x, skips, feature_sizes)
    max_err = float(jnp.max(jnp.abs(out.astype(jnp.float32) - ref)))
    assert max_err < 8e-2, max_err

    print("KERNEL_OK")
</pallas_src>

<mosaic_0001>
module attributes {stable_mosaic.version = 11 : i64} {
  func.func @_conv3x3_kernel(%arg0: i32, %arg1: i32, %arg2: i32, %arg3: memref<1x72x160xbf16, #tpu.memory_space<vmem>>, %arg4: memref<1440x32xbf16, #tpu.memory_space<vmem>>, %arg5: memref<1x32xf32, #tpu.memory_space<vmem>>, %arg6: memref<1x48x32xbf16, #tpu.memory_space<vmem>>, %arg7: memref<48x32xf32, #tpu.memory_space<vmem>>) attributes {dimension_semantics = [#tpu.dimension_semantics<parallel>, #tpu.dimension_semantics<parallel>, #tpu.dimension_semantics<arbitrary>], iteration_bounds = array<i64: 1, 1, 1>, scalar_prefetch = 0 : i64, scratch_operands = 1 : i64, tpu.core_type = #tpu.core_type<tc>, window_params = [{transform_indices = @transform_0, window_bounds = array<i64: 1, 72, 160>}, {transform_indices = @transform_1, window_bounds = array<i64: 1440, 32>}, {transform_indices = @transform_2, window_bounds = array<i64: 1, 32>}, {transform_indices = @transform_3, window_bounds = array<i64: 1, 48, 32>}]} {
    %c48_i32 = arith.constant 48 : i32
    %0 = arith.muli %arg2, %c48_i32 : i32
    %1 = tpu.assume_multiple %0, 8 : i32
    %cst = arith.constant 0.000000e+00 : f32
    %2 = vector.broadcast %cst : f32 to vector<48x32xf32>
    %c0 = arith.constant 0 : index
    %c0_0 = arith.constant 0 : index
    %3 = vector.load %arg7[%c0, %c0_0] : memref<48x32xf32, #tpu.memory_space<vmem>>, vector<48x32xf32>
    tpu.vector_store %arg7[%c0, %c0_0], %2 {strides = array<i32>} : memref<48x32xf32, #tpu.memory_space<vmem>>, vector<48x32xf32>,
    %c0_i32 = arith.constant 0 : i32
    %4 = arith.addi %1, %c0_i32 : i32
    %5 = tpu.assume_multiple %4, 8 : i32
    %c0_1 = arith.constant 0 : index
    %6 = arith.index_cast %5 : i32 to index
    %c0_2 = arith.constant 0 : index
    %7 = vector.load %arg3[%c0_1, %6, %c0_2] : memref<1x72x160xbf16, #tpu.memory_space<vmem>>, vector<1x56x160xbf16>
    %8 = vector.shape_cast %7 : vector<1x56x160xbf16> to vector<56x160xbf16>
    %c0_3 = arith.constant 0 : index
    %c0_4 = arith.constant 0 : index
    %9 = vector.load %arg4[%c0_3, %c0_4] : memref<1440x32xbf16, #tpu.memory_space<vmem>>, vector<160x32xbf16>
    %c0_5 = arith.constant 0 : index
    %c0_6 = arith.constant 0 : index
    %10 = vector.load %arg7[%c0_5, %c0_6] : memref<48x32xf32, #tpu.memory_space<vmem>>, vector<48x32xf32>
    %11 = vector.extract_strided_slice %8 {offsets = [0, 0], sizes = [48, 160], strides = [1, 1]} : vector<56x160xbf16> to vector<48x160xbf16>
    %cst_7 = arith.constant dense<0.000000e+00> : vector<48x32xf32>
    %12 = tpu.matmul %11, %9, %cst_7 {dimension_numbers = #tpu.dot_dimension_numbers<[1], [0], [0], [1], [0, 0, 1, 1], [], []>} : vector<48x160xbf16>, vector<160x32xbf16>, vector<48x32xf32> -> vector<48x32xf32>
    %13 = arith.addf %10, %12 : vector<48x32xf32>
    %c0_8 = arith.constant 0 : index
    %c0_9 = arith.constant 0 : index
    %14 = vector.load %arg7[%c0_8, %c0_9] : memref<48x32xf32, #tpu.memory_space<vmem>>, vector<48x32xf32>
    tpu.vector_store %arg7[%c0_8, %c0_9], %13 {strides = array<i32>} : memref<48x32xf32, #tpu.memory_space<vmem>>, vector<48x32xf32>,
    %c160 = arith.constant 160 : index
    %c0_10 = arith.constant 0 : index
    %15 = vector.load %arg4[%c160, %c0_10] : memref<1440x32xbf16, #tpu.memory_space<vmem>>, vector<160x32xbf16>
    %c0_11 = arith.constant 0 : index
    %c0_12 = arith.constant 0 : index
    %16 = vector.load %arg7[%c0_11, %c0_12] : memref<48x32xf32, #tpu.memory_space<vmem>>, vector<48x32xf32>
    %17 = vector.extract_strided_slice %8 {offsets = [1, 0], sizes = [48, 160], strides = [1, 1]} : vector<56x160xbf16> to vector<48x160xbf16>
    %cst_13 = arith.constant dense<0.000000e+00> : vector<48x32xf32>
    %18 = tpu.matmul %17, %15, %cst_13 {dimension_numbers = #tpu.dot_dimension_numbers<[1], [0], [0], [1], [0, 0, 1, 1], [], []>} : vector<48x160xbf16>, vector<160x32xbf16>, vector<48x32xf32> -> vector<48x32xf32>
    %19 = arith.addf %16, %18 : vector<48x32xf32>
    %c0_14 = arith.constant 0 : index
    %c0_15 = arith.constant 0 : index
    %20 = vector.load %arg7[%c0_14, %c0_15] : memref<48x32xf32, #tpu.memory_space<vmem>>, vector<48x32xf32>
    tpu.vector_store %arg7[%c0_14, %c0_15], %19 {strides = array<i32>} : memref<48x32xf32, #tpu.memory_space<vmem>>, vector<48x32xf32>,
    %c320 = arith.constant 320 : index
    %c0_16 = arith.constant 0 : index
    %21 = vector.load %arg4[%c320, %c0_16] : memref<1440x32xbf16, #tpu.memory_space<vmem>>, vector<160x32xbf16>
    %c0_17 = arith.constant 0 : index
    %c0_18 = arith.constant 0 : index
    %22 = vector.load %arg7[%c0_17, %c0_18] : memref<48x32xf32, #tpu.memory_space<vmem>>, vector<48x32xf32>
    %23 = vector.extract_strided_slice %8 {offsets = [2, 0], sizes = [48, 160], strides = [1, 1]} : vector<56x160xbf16> to vector<48x160xbf16>
    %cst_19 = arith.constant dense<0.000000e+00> : vector<48x32xf32>
    %24 = tpu.matmul %23, %21, %cst_19 {dimension_numbers = #tpu.dot_dimension_numbers<[1], [0], [0], [1], [0, 0, 1, 1], [], []>} : vector<48x160xbf16>, vector<160x32xbf16>, vector<48x32xf32> -> vector<48x32xf32>
    %25 = arith.addf %22, %24 : vector<48x32xf32>
    %c0_20 = arith.constant 0 : index
    %c0_21 = arith.constant 0 : index
    %26 = vector.load %arg7[%c0_20, %c0_21] : memref<48x32xf32, #tpu.memory_space<vmem>>, vector<48x32xf32>
    tpu.vector_store %arg7[%c0_20, %c0_21], %25 {strides = array<i32>} : memref<48x32xf32, #tpu.memory_space<vmem>>, vector<48x32xf32>,
    %c8_i32 = arith.constant 8 : i32
    %27 = arith.addi %1, %c8_i32 : i32
    %28 = tpu.assume_multiple %27, 8 : i32
    %c0_22 = arith.constant 0 : index
    %29 = arith.index_cast %28 : i32 to index
    %c0_23 = arith.constant 0 : index
    %30 = vector.load %arg3[%c0_22, %29, %c0_23] : memref<1x72x160xbf16, #tpu.memory_space<vmem>>, vector<1x56x160xbf16>
    %31 = vector.shape_cast %30 : vector<1x56x160xbf16> to vector<56x160xbf16>
    %c480 = arith.constant 480 : index
    %c0_24 = arith.constant 0 : index
    %32 = vector.load %arg4[%c480, %c0_24] : memref<1440x32xbf16, #tpu.memory_space<vmem>>, vector<160x32xbf16>
    %c0_25 = arith.constant 0 : index
    %c0_26 = arith.constant 0 : index
    %33 = vector.load %arg7[%c0_25, %c0_26] : memref<48x32xf32, #tpu.memory_space<vmem>>, vector<48x32xf32>
    %34 = vector.extract_strided_slice %31 {offsets = [0, 0], sizes = [48, 160], strides = [1, 1]} : vector<56x160xbf16> to vector<48x160xbf16>
    %cst_27 = arith.constant dense<0.000000e+00> : vector<48x32xf32>
    %35 = tpu.matmul %34, %32, %cst_27 {dimension_numbers = #tpu.dot_dimension_numbers<[1], [0], [0], [1], [0, 0, 1, 1], [], []>} : vector<48x160xbf16>, vector<160x32xbf16>, vector<48x32xf32> -> vector<48x32xf32>
    %36 = arith.addf %33, %35 : vector<48x32xf32>
    %c0_28 = arith.constant 0 : index
    %c0_29 = arith.constant 0 : index
    %37 = vector.load %arg7[%c0_28, %c0_29] : memref<48x32xf32, #tpu.memory_space<vmem>>, vector<48x32xf32>
    tpu.vector_store %arg7[%c0_28, %c0_29], %36 {strides = array<i32>} : memref<48x32xf32, #tpu.memory_space<vmem>>, vector<48x32xf32>,
    %c640 = arith.constant 640 : index
    %c0_30 = arith.constant 0 : index
    %38 = vector.load %arg4[%c640, %c0_30] : memref<1440x32xbf16, #tpu.memory_space<vmem>>, vector<160x32xbf16>
    %c0_31 = arith.constant 0 : index
    %c0_32 = arith.constant 0 : index
    %39 = vector.load %arg7[%c0_31, %c0_32] : memref<48x32xf32, #tpu.memory_space<vmem>>, vector<48x32xf32>
    %40 = vector.extract_strided_slice %31 {offsets = [1, 0], sizes = [48, 160], strides = [1, 1]} : vector<56x160xbf16> to vector<48x160xbf16>
    %cst_33 = arith.constant dense<0.000000e+00> : vector<48x32xf32>
    %41 = tpu.matmul %40, %38, %cst_33 {dimension_numbers = #tpu.dot_dimension_numbers<[1], [0], [0], [1], [0, 0, 1, 1], [], []>} : vector<48x160xbf16>, vector<160x32xbf16>, vector<48x32xf32> -> vector<48x32xf32>
    %42 = arith.addf %39, %41 : vector<48x32xf32>
    %c0_34 = arith.constant 0 : index
    %c0_35 = arith.constant 0 : index
    %43 = vector.load %arg7[%c0_34, %c0_35] : memref<48x32xf32, #tpu.memory_space<vmem>>, vector<48x32xf32>
    tpu.vector_store %arg7[%c0_34, %c0_35], %42 {strides = array<i32>} : memref<48x32xf32, #tpu.memory_space<vmem>>, vector<48x32xf32>,
    %c800 = arith.constant 800 : index
    %c0_36 = arith.constant 0 : index
    %44 = vector.load %arg4[%c800, %c0_36] : memref<1440x32xbf16, #tpu.memory_space<vmem>>, vector<160x32xbf16>
    %c0_37 = arith.constant 0 : index
    %c0_38 = arith.constant 0 : index
    %45 = vector.load %arg7[%c0_37, %c0_38] : memref<48x32xf32, #tpu.memory_space<vmem>>, vector<48x32xf32>
    %46 = vector.extract_strided_slice %31 {offsets = [2, 0], sizes = [48, 160], strides = [1, 1]} : vector<56x160xbf16> to vector<48x160xbf16>
    %cst_39 = arith.constant dense<0.000000e+00> : vector<48x32xf32>
    %47 = tpu.matmul %46, %44, %cst_39 {dimension_numbers = #tpu.dot_dimension_numbers<[1], [0], [0], [1], [0, 0, 1, 1], [], []>} : vector<48x160xbf16>, vector<160x32xbf16>, vector<48x32xf32> -> vector<48x32xf32>
    %48 = arith.addf %45, %47 : vector<48x32xf32>
    %c0_40 = arith.constant 0 : index
    %c0_41 = arith.constant 0 : index
    %49 = vector.load %arg7[%c0_40, %c0_41] : memref<48x32xf32, #tpu.memory_space<vmem>>, vector<48x32xf32>
    tpu.vector_store %arg7[%c0_40, %c0_41], %48 {strides = array<i32>} : memref<48x32xf32, #tpu.memory_space<vmem>>, vector<48x32xf32>,
    %c16_i32 = arith.constant 16 : i32
    %50 = arith.addi %1, %c16_i32 : i32
    %51 = tpu.assume_multiple %50, 8 : i32
    %c0_42 = arith.constant 0 : index
    %52 = arith.index_cast %51 : i32 to index
    %c0_43 = arith.constant 0 : index
    %53 = vector.load %arg3[%c0_42, %52, %c0_43] : memref<1x72x160xbf16, #tpu.memory_space<vmem>>, vector<1x56x160xbf16>
    %54 = vector.shape_cast %53 : vector<1x56x160xbf16> to vector<56x160xbf16>
    %c960 = arith.constant 960 : index
    %c0_44 = arith.constant 0 : index
    %55 = vector.load %arg4[%c960, %c0_44] : memref<1440x32xbf16, #tpu.memory_space<vmem>>, vector<160x32xbf16>
    %c0_45 = arith.constant 0 : index
    %c0_46 = arith.constant 0 : index
    %56 = vector.load %arg7[%c0_45, %c0_46] : memref<48x32xf32, #tpu.memory_space<vmem>>, vector<48x32xf32>
    %57 = vector.extract_strided_slice %54 {offsets = [0, 0], sizes = [48, 160], strides = [1, 1]} : vector<56x160xbf16> to vector<48x160xbf16>
    %cst_47 = arith.constant dense<0.000000e+00> : vector<48x32xf32>
    %58 = tpu.matmul %57, %55, %cst_47 {dimension_numbers = #tpu.dot_dimension_numbers<[1], [0], [0], [1], [0, 0, 1, 1], [], []>} : vector<48x160xbf16>, vector<160x32xbf16>, vector<48x32xf32> -> vector<48x32xf32>
    %59 = arith.addf %56, %58 : vector<48x32xf32>
    %c0_48 = arith.constant 0 : index
    %c0_49 = arith.constant 0 : index
    %60 = vector.load %arg7[%c0_48, %c0_49] : memref<48x32xf32, #tpu.memory_space<vmem>>, vector<48x32xf32>
    tpu.vector_store %arg7[%c0_48, %c0_49], %59 {strides = array<i32>} : memref<48x32xf32, #tpu.memory_space<vmem>>, vector<48x32xf32>,
    %c1120 = arith.constant 1120 : index
    %c0_50 = arith.constant 0 : index
    %61 = vector.load %arg4[%c1120, %c0_50] : memref<1440x32xbf16, #tpu.memory_space<vmem>>, vector<160x32xbf16>
    %c0_51 = arith.constant 0 : index
    %c0_52 = arith.constant 0 : index
    %62 = vector.load %arg7[%c0_51, %c0_52] : memref<48x32xf32, #tpu.memory_space<vmem>>, vector<48x32xf32>
    %63 = vector.extract_strided_slice %54 {offsets = [1, 0], sizes = [48, 160], strides = [1, 1]} : vector<56x160xbf16> to vector<48x160xbf16>
    %cst_53 = arith.constant dense<0.000000e+00> : vector<48x32xf32>
    %64 = tpu.matmul %63, %61, %cst_53 {dimension_numbers = #tpu.dot_dimension_numbers<[1], [0], [0], [1], [0, 0, 1, 1], [], []>} : vector<48x160xbf16>, vector<160x32xbf16>, vector<48x32xf32> -> vector<48x32xf32>
    %65 = arith.addf %62, %64 : vector<48x32xf32>
    %c0_54 = arith.constant 0 : index
    %c0_55 = arith.constant 0 : index
    %66 = vector.load %arg7[%c0_54, %c0_55] : memref<48x32xf32, #tpu.memory_space<vmem>>, vector<48x32xf32>
    tpu.vector_store %arg7[%c0_54, %c0_55], %65 {strides = array<i32>} : memref<48x32xf32, #tpu.memory_space<vmem>>, vector<48x32xf32>,
    %c1280 = arith.constant 1280 : index
    %c0_56 = arith.constant 0 : index
    %67 = vector.load %arg4[%c1280, %c0_56] : memref<1440x32xbf16, #tpu.memory_space<vmem>>, vector<160x32xbf16>
    %c0_57 = arith.constant 0 : index
    %c0_58 = arith.constant 0 : index
    %68 = vector.load %arg7[%c0_57, %c0_58] : memref<48x32xf32, #tpu.memory_space<vmem>>, vector<48x32xf32>
    %69 = vector.extract_strided_slice %54 {offsets = [2, 0], sizes = [48, 160], strides = [1, 1]} : vector<56x160xbf16> to vector<48x160xbf16>
    %cst_59 = arith.constant dense<0.000000e+00> : vector<48x32xf32>
    %70 = tpu.matmul %69, %67, %cst_59 {dimension_numbers = #tpu.dot_dimension_numbers<[1], [0], [0], [1], [0, 0, 1, 1], [], []>} : vector<48x160xbf16>, vector<160x32xbf16>, vector<48x32xf32> -> vector<48x32xf32>
    %71 = arith.addf %68, %70 : vector<48x32xf32>
    %c0_60 = arith.constant 0 : index
    %c0_61 = arith.constant 0 : index
    %72 = vector.load %arg7[%c0_60, %c0_61] : memref<48x32xf32, #tpu.memory_space<vmem>>, vector<48x32xf32>
    tpu.vector_store %arg7[%c0_60, %c0_61], %71 {strides = array<i32>} : memref<48x32xf32, #tpu.memory_space<vmem>>, vector<48x32xf32>,
    %c0_62 = arith.constant 0 : index
    %c0_63 = arith.constant 0 : index
    %73 = vector.load %arg7[%c0_62, %c0_63] : memref<48x32xf32, #tpu.memory_space<vmem>>, vector<48x32xf32>
    %c0_64 = arith.constant 0 : index
    %c0_65 = arith.constant 0 : index
    %74 = vector.load %arg5[%c0_64, %c0_65] : memref<1x32xf32, #tpu.memory_space<vmem>>, vector<1x32xf32>
    %75 = vector.broadcast %74 : vector<1x32xf32> to vector<48x32xf32>
    %76 = arith.addf %73, %75 : vector<48x32xf32>
    %77 = arith.truncf %76 : vector<48x32xf32> to vector<48x32xbf16>
    %c0_66 = arith.constant 0 : index
    %c0_67 = arith.constant 0 : index
    %c0_68 = arith.constant 0 : index
    %78 = vector.load %arg6[%c0_66, %c0_67, %c0_68] : memref<1x48x32xbf16, #tpu.memory_space<vmem>>, vector<1x48x32xbf16>
    %79 = vector.shape_cast %78 : vector<1x48x32xbf16> to vector<48x32xbf16>
    %80 = vector.shape_cast %77 : vector<48x32xbf16> to vector<1x48x32xbf16>
    tpu.vector_store %arg6[%c0_66, %c0_67, %c0_68], %80 {strides = array<i32>} : memref<1x48x32xbf16, #tpu.memory_space<vmem>>, vector<1x48x32xbf16>,
    return
  }
  func.func @transform_0(%arg0: i32, %arg1: i32, %arg2: i32) -> (i32, i32, i32) {
    %c0_i32 = arith.constant 0 : i32
    %c0_i32_0 = arith.constant 0 : i32
    %c0_i32_1 = arith.constant 0 : i32
    return %arg1, %c0_i32, %c0_i32_0 : i32, i32, i32
  }
  func.func @transform_1(%arg0: i32, %arg1: i32, %arg2: i32) -> (i32, i32) {
    %c0_i32 = arith.constant 0 : i32
    %c0_i32_0 = arith.constant 0 : i32
    return %c0_i32, %arg0 : i32, i32
  }
  func.func @transform_2(%arg0: i32, %arg1: i32, %arg2: i32) -> (i32, i32) {
    %c0_i32 = arith.constant 0 : i32
    %c0_i32_0 = arith.constant 0 : i32
    return %c0_i32, %arg0 : i32, i32
  }
  func.func @transform_3(%arg0: i32, %arg1: i32, %arg2: i32) -> (i32, i32, i32) {
    %c0_i32 = arith.constant 0 : i32
    return %arg1, %arg2, %arg0 : i32, i32, i32
  }
}

</mosaic_0001>

<llo_original>
// kernel: _lambda_.1
$region0: #{_lambda_.1}
  #allocation0 [shape = 'u32[]', space=smem, size = 0x4, offset = 0x4, fixed_abs, tag = 'smem constant byte address 0x4 - core index']
  #allocation1 [shape = 'u32[144,128]{1,0:T(1,128)}', space=vmem, size = 0x12000, scoped, tag = 'internal scratch']
  #allocation2 [shape = 'f32[48,32]{1,0:T(8,128)}', space=vmem, size = 0x6000, scoped, tag = 'scratch operand']
  %s0 = inlined_call_operand.vmem [shape: bf16[1,72,160], index: 0, kind: input, shape index: {}]
  %s1 = inlined_call_operand.vmem [shape: bf16[1440,32], index: 1, kind: input, shape index: {}]
  %s2 = inlined_call_operand.vmem [shape: f32[1,32], index: 2, kind: input, shape index: {}]
  %s3 = inlined_call_operand.hbm [shape: bf16[1,48,32], index: 3, kind: output, shape index: {}]
  %s4 = sld [smem:[#allocation0]]
  $region22: #{_lambda_.1} parent=0
    _
  %s6 = ssub.s32 1, %s4
  %s7 = scalar_select 0, %s6, %s4
  $region1: #{_lambda_.1} parent=0
    #allocation3 [shape = 'u8[12288]{0}', space=vmem, size = 0x3000, scoped, tag = 'output window, operand 0, single buffered']
    #allocation4 [shape = 's32[1]{0}', space=sflag, size = 0x4, scoped, tag = 'scoped memory for _lambda_.1']
    %8 = vsyncpa [#allocation4], 0
    // Predicated region
    $region2: #{_lambda_.1} parent=1 // pred_check
      _
    $region3: #{_lambda_.1} parent=1 // pred_check_branch
      %10 = sbr.rel (0) target = $region5
    $region4: #{_lambda_.1} parent=1 // pred_region
      _
    $region5: #{_lambda_.1} parent=1 // pred_fallthru
      _
    // Predicated region
    $region6: #{_lambda_.1} parent=1 // pred_check
      _
    $region7: #{_lambda_.1} parent=1 // pred_check_branch
      %12 = sbr.rel (0) target = $region9
    $region8: #{_lambda_.1} parent=1 // pred_region
      _
    $region9: #{_lambda_.1} parent=1 // pred_fallthru
      _
    // Predicated region
    $region10: #{_lambda_.1} parent=1 // pred_check
      _
    $region11: #{_lambda_.1} parent=1 // pred_check_branch
      %14 = sbr.rel (0) target = $region13
    $region12: #{_lambda_.1} parent=1 // pred_region
      _
    $region13: #{_lambda_.1} parent=1 // pred_fallthru
      _
    %s16 = smul.u32 0, 48
    %vm17 = vcmask 261120
    %18 = vst.msk [vmem:[#allocation2] sm:$0xff] %vm17, 0.0
    %19 = vst.msk [vmem:[#allocation2 + $0x8] sm:$0xff] %vm17, 0.0
    %20 = vst.msk [vmem:[#allocation2 + $0x10] sm:$0xff] %vm17, 0.0
    %21 = vst.msk [vmem:[#allocation2 + $0x18] sm:$0xff] %vm17, 0.0
    %22 = vst.msk [vmem:[#allocation2 + $0x20] sm:$0xff] %vm17, 0.0
    %23 = vst.msk [vmem:[#allocation2 + $0x28] sm:$0xff] %vm17, 0.0
    %s24 = sshra.s32 %s16, 3
    %s25 = sand.u32 %s16, 7
    %s26 = smul.u32 %s24, 2
    %s27 = smul.addr %s26, 4
    %s28 = scalar_lea.vmem %s0, %s27
    %v29 = vld [vmem:[%s28] sm:$0xff]
    %v30 = vld [vmem:[%s28 + $0x8] sm:$0xff]
    %v31 = vld [vmem:[%s28 + $0x10] sm:$0xff]
    %v32 = vld [vmem:[%s28 + $0x18] sm:$0xff]
    %v33 = vld [vmem:[%s28 + $0x20] sm:$0xff]
    %v34 = vld [vmem:[%s28 + $0x28] sm:$0xff]
    %v35 = vld [vmem:[%s28 + $0x30] sm:$0xff]
    %v36 = vld [vmem:[%s1] sm:$0xf]
    %v37 = vld [vmem:[%s1 + $0x4] sm:$0xf]
    %v38 = vld [vmem:[%s1 + $0x8] sm:$0xf]
    %v39 = vld [vmem:[%s1 + $0xc] sm:$0xf]
    %v40 = vld [vmem:[%s1 + $0x10] sm:$0xf]
    %v41 = vld [vmem:[%s1 + $0x14] sm:$0xf]
    %v42 = vld [vmem:[%s1 + $0x18] sm:$0xf]
    %v43 = vld [vmem:[%s1 + $0x1c] sm:$0xf]
    %v44 = vld [vmem:[%s1 + $0x20] sm:$0xf]
    %v45 = vld [vmem:[%s1 + $0x24] sm:$0xf]
    %v46 = vld [vmem:[%s1 + $0x28] sm:$0xf]
    %v47 = vld [vmem:[%s1 + $0x2c] sm:$0xf]
    %v48 = vld [vmem:[%s1 + $0x30] sm:$0xf]
    %v49 = vld [vmem:[%s1 + $0x34] sm:$0xf]
    %v50 = vld [vmem:[%s1 + $0x38] sm:$0xf]
    %v51 = vld [vmem:[%s1 + $0x3c] sm:$0xf]
    %v52 = vld [vmem:[%s1 + $0x40] sm:$0xf]
    %v53 = vld [vmem:[%s1 + $0x44] sm:$0xf]
    %v54 = vld [vmem:[%s1 + $0x48] sm:$0xf]
    %v55 = vld [vmem:[%s1 + $0x4c] sm:$0xf]
    %v56 = vld [vmem:[#allocation2] sm:$0xff]
    %v57 = vld [vmem:[#allocation2 + $0x8] sm:$0xff]
    %v58 = vld [vmem:[#allocation2 + $0x10] sm:$0xff]
    %v59 = vld [vmem:[#allocation2 + $0x18] sm:$0xff]
    %v60 = vld [vmem:[#allocation2 + $0x20] sm:$0xff]
    %v61 = vld [vmem:[#allocation2 + $0x28] sm:$0xff]
    %v68 = vunpack.c.l.b16 %v29
    %v69 = vunpack.c.h.b16 %v29
    %v70 = vunpack.c.l.b16 %v30
    %v71 = vunpack.c.h.b16 %v30
    %v72 = vunpack.c.l.b16 %v31
    %v73 = vunpack.c.h.b16 %v31
    %v74 = vunpack.c.l.b16 %v32
    %v75 = vunpack.c.h.b16 %v32
    %v76 = vunpack.c.l.b16 %v33
    %v77 = vunpack.c.h.b16 %v33
    %v78 = vunpack.c.l.b16 %v34
    %v79 = vunpack.c.h.b16 %v34
    %v80 = vpack.c.b16 %v70, %v68
    %v81 = vpack.c.b16 %v71, %v69
    %v82 = vpack.c.b16 %v74, %v72
    %v83 = vpack.c.b16 %v75, %v73
    %v84 = vpack.c.b16 %v78, %v76
    %v85 = vpack.c.b16 %v79, %v77
    %v109 = vunpack.c.l.b16 %v36
    %v110 = vunpack.c.l.b16 %v37
    %v111 = vunpack.c.l.b16 %v38
    %v112 = vunpack.c.l.b16 %v39
    %v113 = vunpack.c.l.b16 %v40
    %v114 = vunpack.c.l.b16 %v41
    %v115 = vunpack.c.l.b16 %v42
    %v116 = vunpack.c.l.b16 %v43
    %v117 = vunpack.c.l.b16 %v44
    %v118 = vunpack.c.l.b16 %v45
    %v119 = vunpack.c.l.b16 %v46
    %v120 = vunpack.c.l.b16 %v47
    %v121 = vunpack.c.l.b16 %v48
    %v122 = vunpack.c.l.b16 %v49
    %v123 = vunpack.c.l.b16 %v50
    %v124 = vunpack.c.l.b16 %v51
    %v125 = vunpack.c.l.b16 %v52
    %v126 = vunpack.c.l.b16 %v53
    %v127 = vunpack.c.l.b16 %v54
    %v128 = vunpack.c.l.b16 %v55
    %v129 = vpack.c.b16 %v110, %v109
    %v130 = vpack.c.b16 %v112, %v111
    %v131 = vpack.c.b16 %v114, %v113
    %v132 = vpack.c.b16 %v116, %v115
    %v133 = vpack.c.b16 %v118, %v117
    %v134 = vpack.c.b16 %v120, %v119
    %v135 = vpack.c.b16 %v122, %v121
    %v136 = vpack.c.b16 %v124, %v123
    %v137 = vpack.c.b16 %v126, %v125
    %v138 = vpack.c.b16 %v128, %v127
    %v150 = vsel %vm17, %v81, 0
    %v153 = vsel %vm17, %v83, 0
    %v156 = vsel %vm17, %v85, 0
    %158 = vmatprep.subr.bf16.mxu0 0
    %159 = vmatpush1.bf16.msra.mxu0 %v129
    %160 = vmatprep.subr.bf16.mxu0 0
    %161 = vmatpush1.bf16.msra.mxu0 %v130
    %162 = vmatprep.subr.bf16.mxu0 0
    %163 = vmatpush1.bf16.msra.mxu0 %v131
    %164 = vmatprep.subr.bf16.mxu0 0
    %165 = vmatpush1.bf16.msra.mxu0 %v132
    %166 = vmatprep.subr.bf16.mxu0 0
    %167 = vmatpush1.bf16.msra.mxu0 %v133
    %168 = vmatprep.subr.bf16.mxu0 0
    %169 = vmatpush1.bf16.msra.mxu0 %v134
    %170 = vmatprep.subr.bf16.mxu0 0
    %171 = vmatpush1.bf16.msra.mxu0 %v135
    %172 = vmatprep.subr.bf16.mxu0 0
    %173 = vmatpush1.bf16.msra.mxu0 %v136
    %174 = vmatprep.subr.bf16.mxu0 0
    %175 = vmatpush1.bf16.msra.mxu0 %v137
    %176 = vmatprep.subr.bf16.mxu0 0
    %177 = vmatpush1.bf16.msra.mxu0 %v138
    %178 = vmatprep.subr.bf16.mxu0 0
    %179 = vmatpush1.bf16.msra.mxu0 0
    %180 = vmatprep.subr.bf16.mxu0 0
    %181 = vmatpush1.bf16.msra.mxu0 0
    %182 = vmatprep.subr.bf16.mxu0 0
    %183 = vmatpush1.bf16.msra.mxu0 0
    %184 = vmatprep.subr.bf16.mxu0 0
    %185 = vmatpush1.bf16.msra.mxu0 0
    %186 = vmatprep.subr.bf16.mxu0 0
    %187 = vmatpush1.bf16.msra.mxu0 0
    %188 = vmatprep.subr.bf16.mxu0 0
    %189 = vmatpush1.bf16.msra.mxu0 0
    %190 = vmatprep.mubr.bf16.mxu0 %v150
    %191 = vmatmul.mubr.bf16.gmra.mrb[0].mxu0 %v80
    %v192 = vpop.f32.mrb[0].mxu0
    %v193 = vadd.f32 0.0, %v192
    %v194 = vpop.f32.mrb[0].mxu0
    %v195 = vpop.f32.mrb[0].mxu0
    %v196 = vadd.f32 0.0, %v195
    %v197 = vpop.f32.mrb[0].mxu0
    %198 = vmatprep.mubr.bf16.mxu0 %v153
    %199 = vmatmul.mubr.bf16.gmra.mrb[0].mxu0 %v82
    %v200 = vpop.f32.mrb[0].mxu0
    %v201 = vadd.f32 0.0, %v200
    %v202 = vpop.f32.mrb[0].mxu0
    %v203 = vpop.f32.mrb[0].mxu0
    %v204 = vadd.f32 0.0, %v203
    %v205 = vpop.f32.mrb[0].mxu0
    %206 = vmatprep.mubr.bf16.mxu0 %v156
    %207 = vmatmul.mubr.bf16.gmra.mrb[0].mxu0 %v84
    %v208 = vpop.f32.mrb[0].mxu0
    %v209 = vadd.f32 0.0, %v208
    %v210 = vpop.f32.mrb[0].mxu0
    %v211 = vpop.f32.mrb[0].mxu0
    %v212 = vadd.f32 0.0, %v211
    %v213 = vpop.f32.mrb[0].mxu0
    %214 = vdwg.mxu0
    %v215 = vadd.f32 %v56, %v193
    %v216 = vadd.f32 %v57, %v196
    %v217 = vadd.f32 %v58, %v201
    %v218 = vadd.f32 %v59, %v204
    %v219 = vadd.f32 %v60, %v209
    %v220 = vadd.f32 %v61, %v212
    %221 = vst.msk [vmem:[#allocation2] sm:$0xff] %vm17, %v215
    %222 = vst.msk [vmem:[#allocation2 + $0x8] sm:$0xff] %vm17, %v216
    %223 = vst.msk [vmem:[#allocation2 + $0x10] sm:$0xff] %vm17, %v217
    %224 = vst.msk [vmem:[#allocation2 + $0x18] sm:$0xff] %vm17, %v218
    %225 = vst.msk [vmem:[#allocation2 + $0x20] sm:$0xff] %vm17, %v219
    %226 = vst.msk [vmem:[#allocation2 + $0x28] sm:$0xff] %vm17, %v220
    %v227 = vld [vmem:[%s1 + $0x50] sm:$0xf]
    %v228 = vld [vmem:[%s1 + $0x54] sm:$0xf]
    %v229 = vld [vmem:[%s1 + $0x58] sm:$0xf]
    %v230 = vld [vmem:[%s1 + $0x5c] sm:$0xf]
    %v231 = vld [vmem:[%s1 + $0x60] sm:$0xf]
    %v232 = vld [vmem:[%s1 + $0x64] sm:$0xf]
    %v233 = vld [vmem:[%s1 + $0x68] sm:$0xf]
    %v234 = vld [vmem:[%s1 + $0x6c] sm:$0xf]
    %v235 = vld [vmem:[%s1 + $0x70] sm:$0xf]
    %v236 = vld [vmem:[%s1 + $0x74] sm:$0xf]
    %v237 = vld [vmem:[%s1 + $0x78] sm:$0xf]
    %v238 = vld [vmem:[%s1 + $0x7c] sm:$0xf]
    %v239 = vld [vmem:[%s1 + $0x80] sm:$0xf]
    %v240 = vld [vmem:[%s1 + $0x84] sm:$0xf]
    %v241 = vld [vmem:[%s1 + $0x88] sm:$0xf]
    %v242 = vld [vmem:[%s1 + $0x8c] sm:$0xf]
    %v243 = vld [vmem:[%s1 + $0x90] sm:$0xf]
    %v244 = vld [vmem:[%s1 + $0x94] sm:$0xf]
    %v245 = vld [vmem:[%s1 + $0x98] sm:$0xf]
    %v246 = vld [vmem:[%s1 + $0x9c] sm:$0xf]
    %v247 = vld [vmem:[#allocation2] sm:$0xff]
    %v248 = vld [vmem:[#allocation2 + $0x8] sm:$0xff]
    %v249 = vld [vmem:[#allocation2 + $0x10] sm:$0xff]
    %v250 = vld [vmem:[#allocation2 + $0x18] sm:$0xff]
    %v251 = vld [vmem:[#allocation2 + $0x20] sm:$0xff]
    %v252 = vld [vmem:[#allocation2 + $0x28] sm:$0xff]
    %v254 = vunpack.c.l.b16 %v35
    %v255 = vunpack.c.h.b16 %v35
    %v256 = vpack.c.b16 %v254, %v254
    %v257 = vpack.c.b16 %v255, %v255
    %vm258 = vsmask.f32 7424
    %v260 = vshrl.u32 %v80, 16
    %v262 = vshll.u32 %v80, 16
    %v264 = vrot.slane %v262, 1
    %v265 = vor.u32 %v260, %v264
    %v267 = vshll.u32 %v82, 16
    %v269 = vrot.slane %v267, 1
    %v270 = vsel %vm258, %v265, %v269
    %v271 = vshrl.u32 %v81, 16
    %v273 = vshll.u32 %v81, 16
    %v275 = vrot.slane %v273, 1
    %v276 = vor.u32 %v271, %v275
    %v277 = vshll.u32 %v83, 16
    %v279 = vrot.slane %v277, 1
    %v280 = vsel %vm258, %v276, %v279
    %v281 = vshrl.u32 %v82, 16
    %v283 = vor.u32 %v281, %v269
    %v285 = vshll.u32 %v84, 16
    %v287 = vrot.slane %v285, 1
    %v288 = vsel %vm258, %v283, %v287
    %v289 = vshrl.u32 %v83, 16
    %v291 = vor.u32 %v289, %v279
    %v292 = vshll.u32 %v85, 16
    %v294 = vrot.slane %v292, 1
    %v295 = vsel %vm258, %v291, %v294
    %v296 = vshrl.u32 %v84, 16
    %v298 = vor.u32 %v296, %v287
    %v300 = vshll.u32 %v256, 16
    %v302 = vrot.slane %v300, 1
    %v303 = vsel %vm258, %v298, %v302
    %v304 = vshrl.u32 %v85, 16
    %v306 = vor.u32 %v304, %v294
    %v308 = vshll.u32 %v257, 16
    %v310 = vrot.slane %v308, 1
    %v311 = vsel %vm258, %v306, %v310
    %v335 = vunpack.c.l.b16 %v227
    %v336 = vunpack.c.l.b16 %v228
    %v337 = vunpack.c.l.b16 %v229
    %v338 = vunpack.c.l.b16 %v230
    %v339 = vunpack.c.l.b16 %v231
    %v340 = vunpack.c.l.b16 %v232
    %v341 = vunpack.c.l.b16 %v233
    %v342 = vunpack.c.l.b16 %v234
    %v343 = vunpack.c.l.b16 %v235
    %v344 = vunpack.c.l.b16 %v236
    %v345 = vunpack.c.l.b16 %v237
    %v346 = vunpack.c.l.b16 %v238
    %v347 = vunpack.c.l.b16 %v239
    %v348 = vunpack.c.l.b16 %v240
    %v349 = vunpack.c.l.b16 %v241
    %v350 = vunpack.c.l.b16 %v242
    %v351 = vunpack.c.l.b16 %v243
    %v352 = vunpack.c.l.b16 %v244
    %v353 = vunpack.c.l.b16 %v245
    %v354 = vunpack.c.l.b16 %v246
    %v355 = vpack.c.b16 %v336, %v335
    %v356 = vpack.c.b16 %v338, %v337
    %v357 = vpack.c.b16 %v340, %v339
    %v358 = vpack.c.b16 %v342, %v341
    %v359 = vpack.c.b16 %v344, %v343
    %v360 = vpack.c.b16 %v346, %v345
    %v361 = vpack.c.b16 %v348, %v347
    %v362 = vpack.c.b16 %v350, %v349
    %v363 = vpack.c.b16 %v352, %v351
    %v364 = vpack.c.b16 %v354, %v353
    %v376 = vsel %vm17, %v280, 0
    %v379 = vsel %vm17, %v295, 0
    %v382 = vsel %vm17, %v311, 0
    %384 = vmatprep.subr.bf16.mxu0 0
    %385 = vmatpush1.bf16.msra.mxu0 %v355
    %386 = vmatprep.subr.bf16.mxu0 0
    %387 = vmatpush1.bf16.msra.mxu0 %v356
    %388 = vmatprep.subr.bf16.mxu0 0
    %389 = vmatpush1.bf16.msra.mxu0 %v357
    %390 = vmatprep.subr.bf16.mxu0 0
    %391 = vmatpush1.bf16.msra.mxu0 %v358
    %392 = vmatprep.subr.bf16.mxu0 0
    %393 = vmatpush1.bf16.msra.mxu0 %v359
    %394 = vmatprep.subr.bf16.mxu0 0
    %395 = vmatpush1.bf16.msra.mxu0 %v360
    %396 = vmatprep.subr.bf16.mxu0 0
    %397 = vmatpush1.bf16.msra.mxu0 %v361
    %398 = vmatprep.subr.bf16.mxu0 0
    %399 = vmatpush1.bf16.msra.mxu0 %v362
    %400 = vmatprep.subr.bf16.mxu0 0
    %401 = vmatpush1.bf16.msra.mxu0 %v363
    %402 = vmatprep.subr.bf16.mxu0 0
    %403 = vmatpush1.bf16.msra.mxu0 %v364
    %404 = vmatprep.subr.bf16.mxu0 0
    %405 = vmatpush1.bf16.msra.mxu0 0
    %406 = vmatprep.subr.bf16.mxu0 0
    %407 = vmatpush1.bf16.msra.mxu0 0
    %408 = vmatprep.subr.bf16.mxu0 0
    %409 = vmatpush1.bf16.msra.mxu0 0
    %410 = vmatprep.subr.bf16.mxu0 0
    %411 = vmatpush1.bf16.msra.mxu0 0
    %412 = vmatprep.subr.bf16.mxu0 0
    %413 = vmatpush1.bf16.msra.mxu0 0
    %414 = vmatprep.subr.bf16.mxu0 0
    %415 = vmatpush1.bf16.msra.mxu0 0
    %416 = vmatprep.mubr.bf16.mxu0 %v376
    %417 = vmatmul.mubr.bf16.gmra.mrb[0].mxu0 %v270
    %v418 = vpop.f32.mrb[0].mxu0
    %v419 = vadd.f32 0.0, %v418
    %v420 = vpop.f32.mrb[0].mxu0
    %v421 = vpop.f32.mrb[0].mxu0
    %v422 = vadd.f32 0.0, %v421
    %v423 = vpop.f32.mrb[0].mxu0
    %424 = vmatprep.mubr.bf16.mxu0 %v379
    %425 = vmatmul.mubr.bf16.gmra.mrb[0].mxu0 %v288
    %v426 = vpop.f32.mrb[0].mxu0
    %v427 = vadd.f32 0.0, %v426
    %v428 = vpop.f32.mrb[0].mxu0
    %v429 = vpop.f32.mrb[0].mxu0
    %v430 = vadd.f32 0.0, %v429
    %v431 = vpop.f32.mrb[0].mxu0
    %432 = vmatprep.mubr.bf16.mxu0 %v382
    %433 = vmatmul.mubr.bf16.gmra.mrb[0].mxu0 %v303
    %v434 = vpop.f32.mrb[0].mxu0
    %v435 = vadd.f32 0.0, %v434
    %v436 = vpop.f32.mrb[0].mxu0
    %v437 = vpop.f32.mrb[0].mxu0
    %v438 = vadd.f32 0.0, %v437
    %v439 = vpop.f32.mrb[0].mxu0
    %440 = vdwg.mxu0
    %v441 = vadd.f32 %v247, %v419
    %v442 = vadd.f32 %v248, %v422
    %v443 = vadd.f32 %v249, %v427
    %v444 = vadd.f32 %v250, %v430
    %v445 = vadd.f32 %v251, %v435
    %v446 = vadd.f32 %v252, %v438
    %447 = vst.msk [vmem:[#allocation2] sm:$0xff] %vm17, %v441
    %448 = vst.msk [vmem:[#allocation2 + $0x8] sm:$0xff] %vm17, %v442
    %449 = vst.msk [vmem:[#allocation2 + $0x10] sm:$0xff] %vm17, %v443
    %450 = vst.msk [vmem:[#allocation2 + $0x18] sm:$0xff] %vm17, %v444
    %451 = vst.msk [vmem:[#allocation2 + $0x20] sm:$0xff] %vm17, %v445
    %452 = vst.msk [vmem:[#allocation2 + $0x28] sm:$0xff] %vm17, %v446
    %v453 = vld [vmem:[%s1 + $0xa0] sm:$0xf]
    %v454 = vld [vmem:[%s1 + $0xa4] sm:$0xf]
    %v455 = vld [vmem:[%s1 + $0xa8] sm:$0xf]
    %v456 = vld [vmem:[%s1 + $0xac] sm:$0xf]
    %v457 = vld [vmem:[%s1 + $0xb0] sm:$0xf]
    %v458 = vld [vmem:[%s1 + $0xb4] sm:$0xf]
    %v459 = vld [vmem:[%s1 + $0xb8] sm:$0xf]
    %v460 = vld [vmem:[%s1 + $0xbc] sm:$0xf]
    %v461 = vld [vmem:[%s1 + $0xc0] sm:$0xf]
    %v462 = vld [vmem:[%s1 + $0xc4] sm:$0xf]
    %v463 = vld [vmem:[%s1 + $0xc8] sm:$0xf]
    %v464 = vld [vmem:[%s1 + $0xcc] sm:$0xf]
    %v465 = vld [vmem:[%s1 + $0xd0] sm:$0xf]
    %v466 = vld [vmem:[%s1 + $0xd4] sm:$0xf]
    %v467 = vld [vmem:[%s1 + $0xd8] sm:$0xf]
    %v468 = vld [vmem:[%s1 + $0xdc] sm:$0xf]
    %v469 = vld [vmem:[%s1 + $0xe0] sm:$0xf]
    %v470 = vld [vmem:[%s1 + $0xe4] sm:$0xf]
    %v471 = vld [vmem:[%s1 + $0xe8] sm:$0xf]
    %v472 = vld [vmem:[%s1 + $0xec] sm:$0xf]
    %v473 = vld [vmem:[#allocation2] sm:$0xff]
    %v474 = vld [vmem:[#allocation2 + $0x8] sm:$0xff]
    %v475 = vld [vmem:[#allocation2 + $0x10] sm:$0xff]
    %v476 = vld [vmem:[#allocation2 + $0x18] sm:$0xff]
    %v477 = vld [vmem:[#allocation2 + $0x20] sm:$0xff]
    %v478 = vld [vmem:[#allocation2 + $0x28] sm:$0xff]
    %vm479 = vcmask 1046528
    %v480 = vrot.slane %v80, 1
    %v481 = vrot.slane %v82, 1
    %v482 = vsel %vm479, %v480, %v481
    %v483 = vrot.slane %v81, 1
    %v484 = vrot.slane %v83, 1
    %v485 = vsel %vm479, %v483, %v484
    %v486 = vrot.slane %v84, 1
    %v487 = vsel %vm479, %v481, %v486
    %v488 = vrot.slane %v85, 1
    %v489 = vsel %vm479, %v484, %v488
    %v490 = vrot.slane %v256, 1
    %v491 = vsel %vm479, %v486, %v490
    %v492 = vrot.slane %v257, 1
    %v493 = vsel %vm479, %v488, %v492
    %v517 = vunpack.c.l.b16 %v453
    %v518 = vunpack.c.l.b16 %v454
    %v519 = vunpack.c.l.b16 %v455
    %v520 = vunpack.c.l.b16 %v456
    %v521 = vunpack.c.l.b16 %v457
    %v522 = vunpack.c.l.b16 %v458
    %v523 = vunpack.c.l.b16 %v459
    %v524 = vunpack.c.l.b16 %v460
    %v525 = vunpack.c.l.b16 %v461
    %v526 = vunpack.c.l.b16 %v462
    %v527 = vunpack.c.l.b16 %v463
    %v528 = vunpack.c.l.b16 %v464
    %v529 = vunpack.c.l.b16 %v465
    %v530 = vunpack.c.l.b16 %v466
    %v531 = vunpack.c.l.b16 %v467
    %v532 = vunpack.c.l.b16 %v468
    %v533 = vunpack.c.l.b16 %v469
    %v534 = vunpack.c.l.b16 %v470
    %v535 = vunpack.c.l.b16 %v471
    %v536 = vunpack.c.l.b16 %v472
    %v537 = vpack.c.b16 %v518, %v517
    %v538 = vpack.c.b16 %v520, %v519
    %v539 = vpack.c.b16 %v522, %v521
    %v540 = vpack.c.b16 %v524, %v523
    %v541 = vpack.c.b16 %v526, %v525
    %v542 = vpack.c.b16 %v528, %v527
    %v543 = vpack.c.b16 %v530, %v529
    %v544 = vpack.c.b16 %v532, %v531
    %v545 = vpack.c.b16 %v534, %v533
    %v546 = vpack.c.b16 %v536, %v535
    %v558 = vsel %vm17, %v485, 0
    %v561 = vsel %vm17, %v489, 0
    %v564 = vsel %vm17, %v493, 0
    %566 = vmatprep.subr.bf16.mxu0 0
    %567 = vmatpush1.bf16.msra.mxu0 %v537
    %568 = vmatprep.subr.bf16.mxu0 0
    %569 = vmatpush1.bf16.msra.mxu0 %v538
    %570 = vmatprep.subr.bf16.mxu0 0
    %571 = vmatpush1.bf16.msra.mxu0 %v539
    %572 = vmatprep.subr.bf16.mxu0 0
    %573 = vmatpush1.bf16.msra.mxu0 %v540
    %574 = vmatprep.subr.bf16.mxu0 0
    %575 = vmatpush1.bf16.msra.mxu0 %v541
    %576 = vmatprep.subr.bf16.mxu0 0
    %577 = vmatpush1.bf16.msra.mxu0 %v542
    %578 = vmatprep.subr.bf16.mxu0 0
    %579 = vmatpush1.bf16.msra.mxu0 %v543
    %580 = vmatprep.subr.bf16.mxu0 0
    %581 = vmatpush1.bf16.msra.mxu0 %v544
    %582 = vmatprep.subr.bf16.mxu0 0
    %583 = vmatpush1.bf16.msra.mxu0 %v545
    %584 = vmatprep.subr.bf16.mxu0 0
    %585 = vmatpush1.bf16.msra.mxu0 %v546
    %586 = vmatprep.subr.bf16.mxu0 0
    %587 = vmatpush1.bf16.msra.mxu0 0
    %588 = vmatprep.subr.bf16.mxu0 0
    %589 = vmatpush1.bf16.msra.mxu0 0
    %590 = vmatprep.subr.bf16.mxu0 0
    %591 = vmatpush1.bf16.msra.mxu0 0
    %592 = vmatprep.subr.bf16.mxu0 0
    %593 = vmatpush1.bf16.msra.mxu0 0
    %594 = vmatprep.subr.bf16.mxu0 0
    %595 = vmatpush1.bf16.msra.mxu0 0
    %596 = vmatprep.subr.bf16.mxu0 0
    %597 = vmatpush1.bf16.msra.mxu0 0
    %598 = vmatprep.mubr.bf16.mxu0 %v558
    %599 = vmatmul.mubr.bf16.gmra.mrb[0].mxu0 %v482
    %v600 = vpop.f32.mrb[0].mxu0
    %v601 = vadd.f32 0.0, %v600
    %v602 = vpop.f32.mrb[0].mxu0
    %v603 = vpop.f32.mrb[0].mxu0
    %v604 = vadd.f32 0.0, %v603
    %v605 = vpop.f32.mrb[0].mxu0
    %606 = vmatprep.mubr.bf16.mxu0 %v561
    %607 = vmatmul.mubr.bf16.gmra.mrb[0].mxu0 %v487
    %v608 = vpop.f32.mrb[0].mxu0
    %v609 = vadd.f32 0.0, %v608
    %v610 = vpop.f32.mrb[0].mxu0
    %v611 = vpop.f32.mrb[0].mxu0
    %v612 = vadd.f32 0.0, %v611
    %v613 = vpop.f32.mrb[0].mxu0
    %614 = vmatprep.mubr.bf16.mxu0 %v564
    %615 = vmatmul.mubr.bf16.gmra.mrb[0].mxu0 %v491
    %v616 = vpop.f32.mrb[0].mxu0
    %v617 = vadd.f32 0.0, %v616
    %v618 = vpop.f32.mrb[0].mxu0
    %v619 = vpop.f32.mrb[0].mxu0
    %v620 = vadd.f32 0.0, %v619
    %v621 = vpop.f32.mrb[0].mxu0
    %622 = vdwg.mxu0
    %v623 = vadd.f32 %v473, %v601
    %v624 = vadd.f32 %v474, %v604
    %v625 = vadd.f32 %v475, %v609
    %v626 = vadd.f32 %v476, %v612
    %v627 = vadd.f32 %v477, %v617
    %v628 = vadd.f32 %v478, %v620
    %629 = vst.msk [vmem:[#allocation2] sm:$0xff] %vm17, %v623
    %630 = vst.msk [vmem:[#allocation2 + $0x8] sm:$0xff] %vm17, %v624
    %631 = vst.msk [vmem:[#allocation2 + $0x10] sm:$0xff] %vm17, %v625
    %632 = vst.msk [vmem:[#allocation2 + $0x18] sm:$0xff] %vm17, %v626
    %633 = vst.msk [vmem:[#allocation2 + $0x20] sm:$0xff] %vm17, %v627
    %634 = vst.msk [vmem:[#allocation2 + $0x28] sm:$0xff] %vm17, %v628
    %s635 = sadd.s32 %s16, 8
    %s636 = sshra.s32 %s635, 3
    %s637 = sand.u32 %s635, 7
    %s638 = smul.u32 %s636, 2
    %s639 = smul.addr %s638, 4
    %s640 = scalar_lea.vmem %s0, %s639
    %v641 = vld [vmem:[%s640] sm:$0xff]
    %v642 = vld [vmem:[%s640 + $0x8] sm:$0xff]
    %v643 = vld [vmem:[%s640 + $0x10] sm:$0xff]
    %v644 = vld [vmem:[%s640 + $0x18] sm:$0xff]
    %v645 = vld [vmem:[%s640 + $0x20] sm:$0xff]
    %v646 = vld [vmem:[%s640 + $0x28] sm:$0xff]
    %v647 = vld [vmem:[%s640 + $0x30] sm:$0xff]
    %v648 = vld [vmem:[%s1 + $0xf0] sm:$0xf]
    %v649 = vld [vmem:[%s1 + $0xf4] sm:$0xf]
    %v650 = vld [vmem:[%s1 + $0xf8] sm:$0xf]
    %v651 = vld [vmem:[%s1 + $0xfc] sm:$0xf]
    %v652 = vld [vmem:[%s1 + $0x100] sm:$0xf]
    %v653 = vld [vmem:[%s1 + $0x104] sm:$0xf]
    %v654 = vld [vmem:[%s1 + $0x108] sm:$0xf]
    %v655 = vld [vmem:[%s1 + $0x10c] sm:$0xf]
    %v656 = vld [vmem:[%s1 + $0x110] sm:$0xf]
    %v657 = vld [vmem:[%s1 + $0x114] sm:$0xf]
    %v658 = vld [vmem:[%s1 + $0x118] sm:$0xf]
    %v659 = vld [vmem:[%s1 + $0x11c] sm:$0xf]
    %v660 = vld [vmem:[%s1 + $0x120] sm:$0xf]
    %v661 = vld [vmem:[%s1 + $0x124] sm:$0xf]
    %v662 = vld [vmem:[%s1 + $0x128] sm:$0xf]
    %v663 = vld [vmem:[%s1 + $0x12c] sm:$0xf]
    %v664 = vld [vmem:[%s1 + $0x130] sm:$0xf]
    %v665 = vld [vmem:[%s1 + $0x134] sm:$0xf]
    %v666 = vld [vmem:[%s1 + $0x138] sm:$0xf]
    %v667 = vld [vmem:[%s1 + $0x13c] sm:$0xf]
    %v668 = vld [vmem:[#allocation2] sm:$0xff]
    %v669 = vld [vmem:[#allocation2 + $0x8] sm:$0xff]
    %v670 = vld [vmem:[#allocation2 + $0x10] sm:$0xff]
    %v671 = vld [vmem:[#allocation2 + $0x18] sm:$0xff]
    %v672 = vld [vmem:[#allocation2 + $0x20] sm:$0xff]
    %v673 = vld [vmem:[#allocation2 + $0x28] sm:$0xff]
    %v680 = vunpack.c.l.b16 %v641
    %v681 = vunpack.c.h.b16 %v641
    %v682 = vunpack.c.l.b16 %v642
    %v683 = vunpack.c.h.b16 %v642
    %v684 = vunpack.c.l.b16 %v643
    %v685 = vunpack.c.h.b16 %v643
    %v686 = vunpack.c.l.b16 %v644
    %v687 = vunpack.c.h.b16 %v644
    %v688 = vunpack.c.l.b16 %v645
    %v689 = vunpack.c.h.b16 %v645
    %v690 = vunpack.c.l.b16 %v646
    %v691 = vunpack.c.h.b16 %v646
    %v692 = vpack.c.b16 %v682, %v680
    %v693 = vpack.c.b16 %v683, %v681
    %v694 = vpack.c.b16 %v686, %v684
    %v695 = vpack.c.b16 %v687, %v685
    %v696 = vpack.c.b16 %v690, %v688
    %v697 = vpack.c.b16 %v691, %v689
    %v721 = vunpack.c.l.b16 %v648
    %v722 = vunpack.c.l.b16 %v649
    %v723 = vunpack.c.l.b16 %v650
    %v724 = vunpack.c.l.b16 %v651
    %v725 = vunpack.c.l.b16 %v652
    %v726 = vunpack.c.l.b16 %v653
    %v727 = vunpack.c.l.b16 %v654
    %v728 = vunpack.c.l.b16 %v655
    %v729 = vunpack.c.l.b16 %v656
    %v730 = vunpack.c.l.b16 %v657
    %v731 = vunpack.c.l.b16 %v658
    %v732 = vunpack.c.l.b16 %v659
    %v733 = vunpack.c.l.b16 %v660
    %v734 = vunpack.c.l.b16 %v661
    %v735 = vunpack.c.l.b16 %v662
    %v736 = vunpack.c.l.b16 %v663
    %v737 = vunpack.c.l.b16 %v664
    %v738 = vunpack.c.l.b16 %v665
    %v739 = vunpack.c.l.b16 %v666
    %v740 = vunpack.c.l.b16 %v667
    %v741 = vpack.c.b16 %v722, %v721
    %v742 = vpack.c.b16 %v724, %v723
    %v743 = vpack.c.b16 %v726, %v725
    %v744 = vpack.c.b16 %v728, %v727
    %v745 = vpack.c.b16 %v730, %v729
    %v746 = vpack.c.b16 %v732, %v731
    %v747 = vpack.c.b16 %v734, %v733
    %v748 = vpack.c.b16 %v736, %v735
    %v749 = vpack.c.b16 %v738, %v737
    %v750 = vpack.c.b16 %v740, %v739
    %v762 = vsel %vm17, %v693, 0
    %v765 = vsel %vm17, %v695, 0
    %v768 = vsel %vm17, %v697, 0
    %770 = vmatprep.subr.bf16.mxu0 0
    %771 = vmatpush1.bf16.msra.mxu0 %v741
    %772 = vmatprep.subr.bf16.mxu0 0
    %773 = vmatpush1.bf16.msra.mxu0 %v742
    %774 = vmatprep.subr.bf16.mxu0 0
    %775 = vmatpush1.bf16.msra.mxu0 %v743
    %776 = vmatprep.subr.bf16.mxu0 0
    %777 = vmatpush1.bf16.msra.mxu0 %v744
    %778 = vmatprep.subr.bf16.mxu0 0
    %779 = vmatpush1.bf16.msra.mxu0 %v745
    %780 = vmatprep.subr.bf16.mxu0 0
    %781 = vmatpush1.bf16.msra.mxu0 %v746
    %782 = vmatprep.subr.bf16.mxu0 0
    %783 = vmatpush1.bf16.msra.mxu0 %v747
    %784 = vmatprep.subr.bf16.mxu0 0
    %785 = vmatpush1.bf16.msra.mxu0 %v748
    %786 = vmatprep.subr.bf16.mxu0 0
    %787 = vmatpush1.bf16.msra.mxu0 %v749
    %788 = vmatprep.subr.bf16.mxu0 0
    %789 = vmatpush1.bf16.msra.mxu0 %v750
    %790 = vmatprep.subr.bf16.mxu0 0
    %791 = vmatpush1.bf16.msra.mxu0 0
    %792 = vmatprep.subr.bf16.mxu0 0
    %793 = vmatpush1.bf16.msra.mxu0 0
    %794 = vmatprep.subr.bf16.mxu0 0
    %795 = vmatpush1.bf16.msra.mxu0 0
    %796 = vmatprep.subr.bf16.mxu0 0
    %797 = vmatpush1.bf16.msra.mxu0 0
    %798 = vmatprep.subr.bf16.mxu0 0
    %799 = vmatpush1.bf16.msra.mxu0 0
    %800 = vmatprep.subr.bf16.mxu0 0
    %801 = vmatpush1.bf16.msra.mxu0 0
    %802 = vmatprep.mubr.bf16.mxu0 %v762
    %803 = vmatmul.mubr.bf16.gmra.mrb[0].mxu0 %v692
    %v804 = vpop.f32.mrb[0].mxu0
    %v805 = vadd.f32 0.0, %v804
    %v806 = vpop.f32.mrb[0].mxu0
    %v807 = vpop.f32.mrb[0].mxu0
    %v808 = vadd.f32 0.0, %v807
    %v809 = vpop.f32.mrb[0].mxu0
    %810 = vmatprep.mubr.bf16.mxu0 %v765
    %811 = vmatmul.mubr.bf16.gmra.mrb[0].mxu0 %v694
    %v812 = vpop.f32.mrb[0].mxu0
    %v813 = vadd.f32 0.0, %v812
    %v814 = vpop.f32.mrb[0].mxu0
    %v815 = vpop.f32.mrb[0].mxu0
    %v816 = vadd.f32 0.0, %v815
    %v817 = vpop.f32.mrb[0].mxu0
    %818 = vmatprep.mubr.bf16.mxu0 %v768
    %819 = vmatmul.mubr.bf16.gmra.mrb[0].mxu0 %v696
    %v820 = vpop.f32.mrb[0].mxu0
    %v821 = vadd.f32 0.0, %v820
    %v822 = vpop.f32.mrb[0].mxu0
    %v823 = vpop.f32.mrb[0].mxu0
    %v824 = vadd.f32 0.0, %v823
    %v825 = vpop.f32.mrb[0].mxu0
    %826 = vdwg.mxu0
    %v827 = vadd.f32 %v668, %v805
    %v828 = vadd.f32 %v669, %v808
    %v829 = vadd.f32 %v670, %v813
    %v830 = vadd.f32 %v671, %v816
    %v831 = vadd.f32 %v672, %v821
    %v832 = vadd.f32 %v673, %v824
    %833 = vst.msk [vmem:[#allocation2] sm:$0xff] %vm17, %v827
    %834 = vst.msk [vmem:[#allocation2 + $0x8] sm:$0xff] %vm17, %v828
    %835 = vst.msk [vmem:[#allocation2 + $0x10] sm:$0xff] %vm17, %v829
    %836 = vst.msk [vmem:[#allocation2 + $0x18] sm:$0xff] %vm17, %v830
    %837 = vst.msk [vmem:[#allocation2 + $0x20] sm:$0xff] %vm17, %v831
    %838 = vst.msk [vmem:[#allocation2 + $0x28] sm:$0xff] %vm17, %v832
    %v839 = vld [vmem:[%s1 + $0x140] sm:$0xf]
    %v840 = vld [vmem:[%s1 + $0x144] sm:$0xf]
    %v841 = vld [vmem:[%s1 + $0x148] sm:$0xf]
    %v842 = vld [vmem:[%s1 + $0x14c] sm:$0xf]
    %v843 = vld [vmem:[%s1 + $0x150] sm:$0xf]
    %v844 = vld [vmem:[%s1 + $0x154] sm:$0xf]
    %v845 = vld [vmem:[%s1 + $0x158] sm:$0xf]
    %v846 = vld [vmem:[%s1 + $0x15c] sm:$0xf]
    %v847 = vld [vmem:[%s1 + $0x160] sm:$0xf]
    %v848 = vld [vmem:[%s1 + $0x164] sm:$0xf]
    %v849 = vld [vmem:[%s1 + $0x168] sm:$0xf]
    %v850 = vld [vmem:[%s1 + $0x16c] sm:$0xf]
    %v851 = vld [vmem:[%s1 + $0x170] sm:$0xf]
    %v852 = vld [vmem:[%s1 + $0x174] sm:$0xf]
    %v853 = vld [vmem:[%s1 + $0x178] sm:$0xf]
    %v854 = vld [vmem:[%s1 + $0x17c] sm:$0xf]
    %v855 = vld [vmem:[%s1 + $0x180] sm:$0xf]
    %v856 = vld [vmem:[%s1 + $0x184] sm:$0xf]
    %v857 = vld [vmem:[%s1 + $0x188] sm:$0xf]
    %v858 = vld [vmem:[%s1 + $0x18c] sm:$0xf]
    %v859 = vld [vmem:[#allocation2] sm:$0xff]
    %v860 = vld [vmem:[#allocation2 + $0x8] sm:$0xff]
    %v861 = vld [vmem:[#allocation2 + $0x10] sm:$0xff]
    %v862 = vld [vmem:[#allocation2 + $0x18] sm:$0xff]
    %v863 = vld [vmem:[#allocation2 + $0x20] sm:$0xff]
    %v864 = vld [vmem:[#allocation2 + $0x28] sm:$0xff]
    %v866 = vunpack.c.l.b16 %v647
    %v867 = vunpack.c.h.b16 %v647
    %v868 = vpack.c.b16 %v866, %v866
    %v869 = vpack.c.b16 %v867, %v867
    %v871 = vshrl.u32 %v692, 16
    %v873 = vshll.u32 %v692, 16
    %v875 = vrot.slane %v873, 1
    %v876 = vor.u32 %v871, %v875
    %v878 = vshll.u32 %v694, 16
    %v880 = vrot.slane %v878, 1
    %v881 = vsel %vm258, %v876, %v880
    %v882 = vshrl.u32 %v693, 16
    %v884 = vshll.u32 %v693, 16
    %v886 = vrot.slane %v884, 1
    %v887 = vor.u32 %v882, %v886
    %v888 = vshll.u32 %v695, 16
    %v890 = vrot.slane %v888, 1
    %v891 = vsel %vm258, %v887, %v890
    %v892 = vshrl.u32 %v694, 16
    %v894 = vor.u32 %v892, %v880
    %v896 = vshll.u32 %v696, 16
    %v898 = vrot.slane %v896, 1
    %v899 = vsel %vm258, %v894, %v898
    %v900 = vshrl.u32 %v695, 16
    %v902 = vor.u32 %v900, %v890
    %v903 = vshll.u32 %v697, 16
    %v905 = vrot.slane %v903, 1
    %v906 = vsel %vm258, %v902, %v905
    %v907 = vshrl.u32 %v696, 16
    %v909 = vor.u32 %v907, %v898
    %v911 = vshll.u32 %v868, 16
    %v913 = vrot.slane %v911, 1
    %v914 = vsel %vm258, %v909, %v913
    %v915 = vshrl.u32 %v697, 16
    %v917 = vor.u32 %v915, %v905
    %v919 = vshll.u32 %v869, 16
    %v921 = vrot.slane %v919, 1
    %v922 = vsel %vm258, %v917, %v921
    %v946 = vunpack.c.l.b16 %v839
    %v947 = vunpack.c.l.b16 %v840
    %v948 = vunpack.c.l.b16 %v841
    %v949 = vunpack.c.l.b16 %v842
    %v950 = vunpack.c.l.b16 %v843
    %v951 = vunpack.c.l.b16 %v844
    %v952 = vunpack.c.l.b16 %v845
    %v953 = vunpack.c.l.b16 %v846
    %v954 = vunpack.c.l.b16 %v847
    %v955 = vunpack.c.l.b16 %v848
    %v956 = vunpack.c.l.b16 %v849
    %v957 = vunpack.c.l.b16 %v850
    %v958 = vunpack.c.l.b16 %v851
    %v959 = vunpack.c.l.b16 %v852
    %v960 = vunpack.c.l.b16 %v853
    %v961 = vunpack.c.l.b16 %v854
    %v962 = vunpack.c.l.b16 %v855
    %v963 = vunpack.c.l.b16 %v856
    %v964 = vunpack.c.l.b16 %v857
    %v965 = vunpack.c.l.b16 %v858
    %v966 = vpack.c.b16 %v947, %v946
    %v967 = vpack.c.b16 %v949, %v948
    %v968 = vpack.c.b16 %v951, %v950
    %v969 = vpack.c.b16 %v953, %v952
    %v970 = vpack.c.b16 %v955, %v954
    %v971 = vpack.c.b16 %v957, %v956
    %v972 = vpack.c.b16 %v959, %v958
    %v973 = vpack.c.b16 %v961, %v960
    %v974 = vpack.c.b16 %v963, %v962
    %v975 = vpack.c.b16 %v965, %v964
    %v987 = vsel %vm17, %v891, 0
    %v990 = vsel %vm17, %v906, 0
    %v993 = vsel %vm17, %v922, 0
    %995 = vmatprep.subr.bf16.mxu0 0
    %996 = vmatpush1.bf16.msra.mxu0 %v966
    %997 = vmatprep.subr.bf16.mxu0 0
    %998 = vmatpush1.bf16.msra.mxu0 %v967
    %999 = vmatprep.subr.bf16.mxu0 0
    %1000 = vmatpush1.bf16.msra.mxu0 %v968
    %1001 = vmatprep.subr.bf16.mxu0 0
    %1002 = vmatpush1.bf16.msra.mxu0 %v969
    %1003 = vmatprep.subr.bf16.mxu0 0
    %1004 = vmatpush1.bf16.msra.mxu0 %v970
    %1005 = vmatprep.subr.bf16.mxu0 0
    %1006 = vmatpush1.bf16.msra.mxu0 %v971
    %1007 = vmatprep.subr.bf16.mxu0 0
    %1008 = vmatpush1.bf16.msra.mxu0 %v972
    %1009 = vmatprep.subr.bf16.mxu0 0
    %1010 = vmatpush1.bf16.msra.mxu0 %v973
    %1011 = vmatprep.subr.bf16.mxu0 0
    %1012 = vmatpush1.bf16.msra.mxu0 %v974
    %1013 = vmatprep.subr.bf16.mxu0 0
    %1014 = vmatpush1.bf16.msra.mxu0 %v975
    %1015 = vmatprep.subr.bf16.mxu0 0
    %1016 = vmatpush1.bf16.msra.mxu0 0
    %1017 = vmatprep.subr.bf16.mxu0 0
    %1018 = vmatpush1.bf16.msra.mxu0 0
    %1019 = vmatprep.subr.bf16.mxu0 0
    %1020 = vmatpush1.bf16.msra.mxu0 0
    %1021 = vmatprep.subr.bf16.mxu0 0
    %1022 = vmatpush1.bf16.msra.mxu0 0
    %1023 = vmatprep.subr.bf16.mxu0 0
    %1024 = vmatpush1.bf16.msra.mxu0 0
    %1025 = vmatprep.subr.bf16.mxu0 0
    %1026 = vmatpush1.bf16.msra.mxu0 0
    %1027 = vmatprep.mubr.bf16.mxu0 %v987
    %1028 = vmatmul.mubr.bf16.gmra.mrb[0].mxu0 %v881
    %v1029 = vpop.f32.mrb[0].mxu0
    %v1030 = vadd.f32 0.0, %v1029
    %v1031 = vpop.f32.mrb[0].mxu0
    %v1032 = vpop.f32.mrb[0].mxu0
    %v1033 = vadd.f32 0.0, %v1032
    %v1034 = vpop.f32.mrb[0].mxu0
    %1035 = vmatprep.mubr.bf16.mxu0 %v990
    %1036 = vmatmul.mubr.bf16.gmra.mrb[0].mxu0 %v899
    %v1037 = vpop.f32.mrb[0].mxu0
    %v1038 = vadd.f32 0.0, %v1037
    %v1039 = vpop.f32.mrb[0].mxu0
    %v1040 = vpop.f32.mrb[0].mxu0
    %v1041 = vadd.f32 0.0, %v1040
    %v1042 = vpop.f32.mrb[0].mxu0
    %1043 = vmatprep.mubr.bf16.mxu0 %v993
    %1044 = vmatmul.mubr.bf16.gmra.mrb[0].mxu0 %v914
    %v1045 = vpop.f32.mrb[0].mxu0
    %v1046 = vadd.f32 0.0, %v1045
    %v1047 = vpop.f32.mrb[0].mxu0
    %v1048 = vpop.f32.mrb[0].mxu0
    %v1049 = vadd.f32 0.0, %v1048
    %v1050 = vpop.f32.mrb[0].mxu0
    %1051 = vdwg.mxu0
    %v1052 = vadd.f32 %v859, %v1030
    %v1053 = vadd.f32 %v860, %v1033
    %v1054 = vadd.f32 %v861, %v1038
    %v1055 = vadd.f32 %v862, %v1041
    %v1056 = vadd.f32 %v863, %v1046
    %v1057 = vadd.f32 %v864, %v1049
    %1058 = vst.msk [vmem:[#allocation2] sm:$0xff] %vm17, %v1052
    %1059 = vst.msk [vmem:[#allocation2 + $0x8] sm:$0xff] %vm17, %v1053
    %1060 = vst.msk [vmem:[#allocation2 + $0x10] sm:$0xff] %vm17, %v1054
    %1061 = vst.msk [vmem:[#allocation2 + $0x18] sm:$0xff] %vm17, %v1055
    %1062 = vst.msk [vmem:[#allocation2 + $0x20] sm:$0xff] %vm17, %v1056
    %1063 = vst.msk [vmem:[#allocation2 + $0x28] sm:$0xff] %vm17, %v1057
    %v1064 = vld [vmem:[%s1 + $0x190] sm:$0xf]
    %v1065 = vld [vmem:[%s1 + $0x194] sm:$0xf]
    %v1066 = vld [vmem:[%s1 + $0x198] sm:$0xf]
    %v1067 = vld [vmem:[%s1 + $0x19c] sm:$0xf]
    %v1068 = vld [vmem:[%s1 + $0x1a0] sm:$0xf]
    %v1069 = vld [vmem:[%s1 + $0x1a4] sm:$0xf]
    %v1070 = vld [vmem:[%s1 + $0x1a8] sm:$0xf]
    %v1071 = vld [vmem:[%s1 + $0x1ac] sm:$0xf]
    %v1072 = vld [vmem:[%s1 + $0x1b0] sm:$0xf]
    %v1073 = vld [vmem:[%s1 + $0x1b4] sm:$0xf]
    %v1074 = vld [vmem:[%s1 + $0x1b8] sm:$0xf]
    %v1075 = vld [vmem:[%s1 + $0x1bc] sm:$0xf]
    %v1076 = vld [vmem:[%s1 + $0x1c0] sm:$0xf]
    %v1077 = vld [vmem:[%s1 + $0x1c4] sm:$0xf]
    %v1078 = vld [vmem:[%s1 + $0x1c8] sm:$0xf]
    %v1079 = vld [vmem:[%s1 + $0x1cc] sm:$0xf]
    %v1080 = vld [vmem:[%s1 + $0x1d0] sm:$0xf]
    %v1081 = vld [vmem:[%s1 + $0x1d4] sm:$0xf]
    %v1082 = vld [vmem:[%s1 + $0x1d8] sm:$0xf]
    %v1083 = vld [vmem:[%s1 + $0x1dc] sm:$0xf]
    %v1084 = vld [vmem:[#allocation2] sm:$0xff]
    %v1085 = vld [vmem:[#allocation2 + $0x8] sm:$0xff]
    %v1086 = vld [vmem:[#allocation2 + $0x10] sm:$0xff]
    %v1087 = vld [vmem:[#allocation2 + $0x18] sm:$0xff]
    %v1088 = vld [vmem:[#allocation2 + $0x20] sm:$0xff]
    %v1089 = vld [vmem:[#allocation2 + $0x28] sm:$0xff]
    %v1090 = vrot.slane %v692, 1
    %v1091 = vrot.slane %v694, 1
    %v1092 = vsel %vm479, %v1090, %v1091
    %v1093 = vrot.slane %v693, 1
    %v1094 = vrot.slane %v695, 1
    %v1095 = vsel %vm479, %v1093, %v1094
    %v1096 = vrot.slane %v696, 1
    %v1097 = vsel %vm479, %v1091, %v1096
    %v1098 = vrot.slane %v697, 1
    %v1099 = vsel %vm479, %v1094, %v1098
    %v1100 = vrot.slane %v868, 1
    %v1101 = vsel %vm479, %v1096, %v1100
    %v1102 = vrot.slane %v869, 1
    %v1103 = vsel %vm479, %v1098, %v1102
    %v1127 = vunpack.c.l.b16 %v1064
    %v1128 = vunpack.c.l.b16 %v1065
    %v1129 = vunpack.c.l.b16 %v1066
    %v1130 = vunpack.c.l.b16 %v1067
    %v1131 = vunpack.c.l.b16 %v1068
    %v1132 = vunpack.c.l.b16 %v1069
    %v1133 = vunpack.c.l.b16 %v1070
    %v1134 = vunpack.c.l.b16 %v1071
    %v1135 = vunpack.c.l.b16 %v1072
    %v1136 = vunpack.c.l.b16 %v1073
    %v1137 = vunpack.c.l.b16 %v1074
    %v1138 = vunpack.c.l.b16 %v1075
    %v1139 = vunpack.c.l.b16 %v1076
    %v1140 = vunpack.c.l.b16 %v1077
    %v1141 = vunpack.c.l.b16 %v1078
    %v1142 = vunpack.c.l.b16 %v1079
    %v1143 = vunpack.c.l.b16 %v1080
    %v1144 = vunpack.c.l.b16 %v1081
    %v1145 = vunpack.c.l.b16 %v1082
    %v1146 = vunpack.c.l.b16 %v1083
    %v1147 = vpack.c.b16 %v1128, %v1127
    %v1148 = vpack.c.b16 %v1130, %v1129
    %v1149 = vpack.c.b16 %v1132, %v1131
    %v1150 = vpack.c.b16 %v1134, %v1133
    %v1151 = vpack.c.b16 %v1136, %v1135
    %v1152 = vpack.c.b16 %v1138, %v1137
    %v1153 = vpack.c.b16 %v1140, %v1139
    %v1154 = vpack.c.b16 %v1142, %v1141
    %v1155 = vpack.c.b16 %v1144, %v1143
    %v1156 = vpack.c.b16 %v1146, %v1145
    %v1168 = vsel %vm17, %v1095, 0
    %v1171 = vsel %vm17, %v1099, 0
    %v1174 = vsel %vm17, %v1103, 0
    %1176 = vmatprep.subr.bf16.mxu0 0
    %1177 = vmatpush1.bf16.msra.mxu0 %v1147
    %1178 = vmatprep.subr.bf16.mxu0 0
    %1179 = vmatpush1.bf16.msra.mxu0 %v1148
    %1180 = vmatprep.subr.bf16.mxu0 0
    %1181 = vmatpush1.bf16.msra.mxu0 %v1149
    %1182 = vmatprep.subr.bf16.mxu0 0
    %1183 = vmatpush1.bf16.msra.mxu0 %v1150
    %1184 = vmatprep.subr.bf16.mxu0 0
    %1185 = vmatpush1.bf16.msra.mxu0 %v1151
    %1186 = vmatprep.subr.bf16.mxu0 0
    %1187 = vmatpush1.bf16.msra.mxu0 %v1152
    %1188 = vmatprep.subr.bf16.mxu0 0
    %1189 = vmatpush1.bf16.msra.mxu0 %v1153
    %1190 = vmatprep.subr.bf16.mxu0 0
    %1191 = vmatpush1.bf16.msra.mxu0 %v1154
    %1192 = vmatprep.subr.bf16.mxu0 0
    %1193 = vmatpush1.bf16.msra.mxu0 %v1155
    %1194 = vmatprep.subr.bf16.mxu0 0
    %1195 = vmatpush1.bf16.msra.mxu0 %v1156
    %1196 = vmatprep.subr.bf16.mxu0 0
    %1197 = vmatpush1.bf16.msra.mxu0 0
    %1198 = vmatprep.subr.bf16.mxu0 0
    %1199 = vmatpush1.bf16.msra.mxu0 0
    %1200 = vmatprep.subr.bf16.mxu0 0
    %1201 = vmatpush1.bf16.msra.mxu0 0
    %1202 = vmatprep.subr.bf16.mxu0 0
    %1203 = vmatpush1.bf16.msra.mxu0 0
    %1204 = vmatprep.subr.bf16.mxu0 0
    %1205 = vmatpush1.bf16.msra.mxu0 0
    %1206 = vmatprep.subr.bf16.mxu0 0
    %1207 = vmatpush1.bf16.msra.mxu0 0
    %1208 = vmatprep.mubr.bf16.mxu0 %v1168
    %1209 = vmatmul.mubr.bf16.gmra.mrb[0].mxu0 %v1092
    %v1210 = vpop.f32.mrb[0].mxu0
    %v1211 = vadd.f32 0.0, %v1210
    %v1212 = vpop.f32.mrb[0].mxu0
    %v1213 = vpop.f32.mrb[0].mxu0
    %v1214 = vadd.f32 0.0, %v1213
    %v1215 = vpop.f32.mrb[0].mxu0
    %1216 = vmatprep.mubr.bf16.mxu0 %v1171
    %1217 = vmatmul.mubr.bf16.gmra.mrb[0].mxu0 %v1097
    %v1218 = vpop.f32.mrb[0].mxu0
    %v1219 = vadd.f32 0.0, %v1218
    %v1220 = vpop.f32.mrb[0].mxu0
    %v1221 = vpop.f32.mrb[0].mxu0
    %v1222 = vadd.f32 0.0, %v1221
    %v1223 = vpop.f32.mrb[0].mxu0
    %1224 = vmatprep.mubr.bf16.mxu0 %v1174
    %1225 = vmatmul.mubr.bf16.gmra.mrb[0].mxu0 %v1101
    %v1226 = vpop.f32.mrb[0].mxu0
    %v1227 = vadd.f32 0.0, %v1226
    %v1228 = vpop.f32.mrb[0].mxu0
    %v1229 = vpop.f32.mrb[0].mxu0
    %v1230 = vadd.f32 0.0, %v1229
    %v1231 = vpop.f32.mrb[0].mxu0
    %1232 = vdwg.mxu0
    %v1233 = vadd.f32 %v1084, %v1211
    %v1234 = vadd.f32 %v1085, %v1214
    %v1235 = vadd.f32 %v1086, %v1219
    %v1236 = vadd.f32 %v1087, %v1222
    %v1237 = vadd.f32 %v1088, %v1227
    %v1238 = vadd.f32 %v1089, %v1230
    %1239 = vst.msk [vmem:[#allocation2] sm:$0xff] %vm17, %v1233
    %1240 = vst.msk [vmem:[#allocation2 + $0x8] sm:$0xff] %vm17, %v1234
    %1241 = vst.msk [vmem:[#allocation2 + $0x10] sm:$0xff] %vm17, %v1235
    %1242 = vst.msk [vmem:[#allocation2 + $0x18] sm:$0xff] %vm17, %v1236
    %1243 = vst.msk [vmem:[#allocation2 + $0x20] sm:$0xff] %vm17, %v1237
    %1244 = vst.msk [vmem:[#allocation2 + $0x28] sm:$0xff] %vm17, %v1238
    %s1245 = sadd.s32 %s16, 16
    %s1246 = sshra.s32 %s1245, 3
    %s1247 = sand.u32 %s1245, 7
    %s1248 = smul.u32 %s1246, 2
    %s1249 = smul.addr %s1248, 4
    %s1250 = scalar_lea.vmem %s0, %s1249
    %v1251 = vld [vmem:[%s1250] sm:$0xff]
    %v1252 = vld [vmem:[%s1250 + $0x8] sm:$0xff]
    %v1253 = vld [vmem:[%s1250 + $0x10] sm:$0xff]
    %v1254 = vld [vmem:[%s1250 + $0x18] sm:$0xff]
    %v1255 = vld [vmem:[%s1250 + $0x20] sm:$0xff]
    %v1256 = vld [vmem:[%s1250 + $0x28] sm:$0xff]
    %v1257 = vld [vmem:[%s1250 + $0x30] sm:$0xff]
    %v1258 = vld [vmem:[%s1 + $0x1e0] sm:$0xf]
    %v1259 = vld [vmem:[%s1 + $0x1e4] sm:$0xf]
    %v1260 = vld [vmem:[%s1 + $0x1e8] sm:$0xf]
    %v1261 = vld [vmem:[%s1 + $0x1ec] sm:$0xf]
    %v1262 = vld [vmem:[%s1 + $0x1f0] sm:$0xf]
    %v1263 = vld [vmem:[%s1 + $0x1f4] sm:$0xf]
    %v1264 = vld [vmem:[%s1 + $0x1f8] sm:$0xf]
    %v1265 = vld [vmem:[%s1 + $0x1fc] sm:$0xf]
    %v1266 = vld [vmem:[%s1 + $0x200] sm:$0xf]
    %v1267 = vld [vmem:[%s1 + $0x204] sm:$0xf]
    %v1268 = vld [vmem:[%s1 + $0x208] sm:$0xf]
    %v1269 = vld [vmem:[%s1 + $0x20c] sm:$0xf]
    %v1270 = vld [vmem:[%s1 + $0x210] sm:$0xf]
    %v1271 = vld [vmem:[%s1 + $0x214] sm:$0xf]
    %v1272 = vld [vmem:[%s1 + $0x218] sm:$0xf]
    %v1273 = vld [vmem:[%s1 + $0x21c] sm:$0xf]
    %v1274 = vld [vmem:[%s1 + $0x220] sm:$0xf]
    %v1275 = vld [vmem:[%s1 + $0x224] sm:$0xf]
    %v1276 = vld [vmem:[%s1 + $0x228] sm:$0xf]
    %v1277 = vld [vmem:[%s1 + $0x22c] sm:$0xf]
    %v1278 = vld [vmem:[#allocation2] sm:$0xff]
    %v1279 = vld [vmem:[#allocation2 + $0x8] sm:$0xff]
    %v1280 = vld [vmem:[#allocation2 + $0x10] sm:$0xff]
    %v1281 = vld [vmem:[#allocation2 + $0x18] sm:$0xff]
    %v1282 = vld [vmem:[#allocation2 + $0x20] sm:$0xff]
    %v1283 = vld [vmem:[#allocation2 + $0x28] sm:$0xff]
    %v1290 = vunpack.c.l.b16 %v1251
    %v1291 = vunpack.c.h.b16 %v1251
    %v1292 = vunpack.c.l.b16 %v1252
    %v1293 = vunpack.c.h.b16 %v1252
    %v1294 = vunpack.c.l.b16 %v1253
    %v1295 = vunpack.c.h.b16 %v1253
    %v1296 = vunpack.c.l.b16 %v1254
    %v1297 = vunpack.c.h.b16 %v1254
    %v1298 = vunpack.c.l.b16 %v1255
    %v1299 = vunpack.c.h.b16 %v1255
    %v1300 = vunpack.c.l.b16 %v1256
    %v1301 = vunpack.c.h.b16 %v1256
    %v1302 = vpack.c.b16 %v1292, %v1290
    %v1303 = vpack.c.b16 %v1293, %v1291
    %v1304 = vpack.c.b16 %v1296, %v1294
    %v1305 = vpack.c.b16 %v1297, %v1295
    %v1306 = vpack.c.b16 %v1300, %v1298
    %v1307 = vpack.c.b16 %v1301, %v1299
    %v1331 = vunpack.c.l.b16 %v1258
    %v1332 = vunpack.c.l.b16 %v1259
    %v1333 = vunpack.c.l.b16 %v1260
    %v1334 = vunpack.c.l.b16 %v1261
    %v1335 = vunpack.c.l.b16 %v1262
    %v1336 = vunpack.c.l.b16 %v1263
    %v1337 = vunpack.c.l.b16 %v1264
    %v1338 = vunpack.c.l.b16 %v1265
    %v1339 = vunpack.c.l.b16 %v1266
    %v1340 = vunpack.c.l.b16 %v1267
    %v1341 = vunpack.c.l.b16 %v1268
    %v1342 = vunpack.c.l.b16 %v1269
    %v1343 = vunpack.c.l.b16 %v1270
    %v1344 = vunpack.c.l.b16 %v1271
    %v1345 = vunpack.c.l.b16 %v1272
    %v1346 = vunpack.c.l.b16 %v1273
    %v1347 = vunpack.c.l.b16 %v1274
    %v1348 = vunpack.c.l.b16 %v1275
    %v1349 = vunpack.c.l.b16 %v1276
    %v1350 = vunpack.c.l.b16 %v1277
    %v1351 = vpack.c.b16 %v1332, %v1331
    %v1352 = vpack.c.b16 %v1334, %v1333
    %v1353 = vpack.c.b16 %v1336, %v1335
    %v1354 = vpack.c.b16 %v1338, %v1337
    %v1355 = vpack.c.b16 %v1340, %v1339
    %v1356 = vpack.c.b16 %v1342, %v1341
    %v1357 = vpack.c.b16 %v1344, %v1343
    %v1358 = vpack.c.b16 %v1346, %v1345
    %v1359 = vpack.c.b16 %v1348, %v1347
    %v1360 = vpack.c.b16 %v1350, %v1349
    %v1372 = vsel %vm17, %v1303, 0
    %v1375 = vsel %vm17, %v1305, 0
    %v1378 = vsel %vm17, %v1307, 0
    %1380 = vmatprep.subr.bf16.mxu0 0
    %1381 = vmatpush1.bf16.msra.mxu0 %v1351
    %1382 = vmatprep.subr.bf16.mxu0 0
    %1383 = vmatpush1.bf16.msra.mxu0 %v1352
    %1384 = vmatprep.subr.bf16.mxu0 0
    %1385 = vmatpush1.bf16.msra.mxu0 %v1353
    %1386 = vmatprep.subr.bf16.mxu0 0
    %1387 = vmatpush1.bf16.msra.mxu0 %v1354
    %1388 = vmatprep.subr.bf16.mxu0 0
    %1389 = vmatpush1.bf16.msra.mxu0 %v1355
    %1390 = vmatprep.subr.bf16.mxu0 0
    %1391 = vmatpush1.bf16.msra.mxu0 %v1356
    %1392 = vmatprep.subr.bf16.mxu0 0
    %1393 = vmatpush1.bf16.msra.mxu0 %v1357
    %1394 = vmatprep.subr.bf16.mxu0 0
    %1395 = vmatpush1.bf16.msra.mxu0 %v1358
    %1396 = vmatprep.subr.bf16.mxu0 0
    %1397 = vmatpush1.bf16.msra.mxu0 %v1359
    %1398 = vmatprep.subr.bf16.mxu0 0
    %1399 = vmatpush1.bf16.msra.mxu0 %v1360
    %1400 = vmatprep.subr.bf16.mxu0 0
    %1401 = vmatpush1.bf16.msra.mxu0 0
    %1402 = vmatprep.subr.bf16.mxu0 0
    %1403 = vmatpush1.bf16.msra.mxu0 0
    %1404 = vmatprep.subr.bf16.mxu0 0
    %1405 = vmatpush1.bf16.msra.mxu0 0
    %1406 = vmatprep.subr.bf16.mxu0 0
    %1407 = vmatpush1.bf16.msra.mxu0 0
    %1408 = vmatprep.subr.bf16.mxu0 0
    %1409 = vmatpush1.bf16.msra.mxu0 0
    %1410 = vmatprep.subr.bf16.mxu0 0
    %1411 = vmatpush1.bf16.msra.mxu0 0
    %1412 = vmatprep.mubr.bf16.mxu0 %v1372
    %1413 = vmatmul.mubr.bf16.gmra.mrb[0].mxu0 %v1302
    %v1414 = vpop.f32.mrb[0].mxu0
    %v1415 = vadd.f32 0.0, %v1414
    %v1416 = vpop.f32.mrb[0].mxu0
    %v1417 = vpop.f32.mrb[0].mxu0
    %v1418 = vadd.f32 0.0, %v1417
    %v1419 = vpop.f32.mrb[0].mxu0
    %1420 = vmatprep.mubr.bf16.mxu0 %v1375
    %1421 = vmatmul.mubr.bf16.gmra.mrb[0].mxu0 %v1304
    %v1422 = vpop.f32.mrb[0].mxu0
    %v1423 = vadd.f32 0.0, %v1422
    %v1424 = vpop.f32.mrb[0].mxu0
    %v1425 = vpop.f32.mrb[0].mxu0
    %v1426 = vadd.f32 0.0, %v1425
    %v1427 = vpop.f32.mrb[0].mxu0
    %1428 = vmatprep.mubr.bf16.mxu0 %v1378
    %1429 = vmatmul.mubr.bf16.gmra.mrb[0].mxu0 %v1306
    %v1430 = vpop.f32.mrb[0].mxu0
    %v1431 = vadd.f32 0.0, %v1430
    %v1432 = vpop.f32.mrb[0].mxu0
    %v1433 = vpop.f32.mrb[0].mxu0
    %v1434 = vadd.f32 0.0, %v1433
    %v1435 = vpop.f32.mrb[0].mxu0
    %1436 = vdwg.mxu0
    %v1437 = vadd.f32 %v1278, %v1415
    %v1438 = vadd.f32 %v1279, %v1418
    %v1439 = vadd.f32 %v1280, %v1423
    %v1440 = vadd.f32 %v1281, %v1426
    %v1441 = vadd.f32 %v1282, %v1431
    %v1442 = vadd.f32 %v1283, %v1434
    %1443 = vst.msk [vmem:[#allocation2] sm:$0xff] %vm17, %v1437
    %1444 = vst.msk [vmem:[#allocation2 + $0x8] sm:$0xff] %vm17, %v1438
    %1445 = vst.msk [vmem:[#allocation2 + $0x10] sm:$0xff] %vm17, %v1439
    %1446 = vst.msk [vmem:[#allocation2 + $0x18] sm:$0xff] %vm17, %v1440
    %1447 = vst.msk [vmem:[#allocation2 + $0x20] sm:$0xff] %vm17, %v1441
    %1448 = vst.msk [vmem:[#allocation2 + $0x28] sm:$0xff] %vm17, %v1442
    %v1449 = vld [vmem:[%s1 + $0x230] sm:$0xf]
    %v1450 = vld [vmem:[%s1 + $0x234] sm:$0xf]
    %v1451 = vld [vmem:[%s1 + $0x238] sm:$0xf]
    %v1452 = vld [vmem:[%s1 + $0x23c] sm:$0xf]
    %v1453 = vld [vmem:[%s1 + $0x240] sm:$0xf]
    %v1454 = vld [vmem:[%s1 + $0x244] sm:$0xf]
    %v1455 = vld [vmem:[%s1 + $0x248] sm:$0xf]
    %v1456 = vld [vmem:[%s1 + $0x24c] sm:$0xf]
    %v1457 = vld [vmem:[%s1 + $0x250] sm:$0xf]
    %v1458 = vld [vmem:[%s1 + $0x254] sm:$0xf]
    %v1459 = vld [vmem:[%s1 + $0x258] sm:$0xf]
    %v1460 = vld [vmem:[%s1 + $0x25c] sm:$0xf]
    %v1461 = vld [vmem:[%s1 + $0x260] sm:$0xf]
    %v1462 = vld [vmem:[%s1 + $0x264] sm:$0xf]
    %v1463 = vld [vmem:[%s1 + $0x268] sm:$0xf]
    %v1464 = vld [vmem:[%s1 + $0x26c] sm:$0xf]
    %v1465 = vld [vmem:[%s1 + $0x270] sm:$0xf]
    %v1466 = vld [vmem:[%s1 + $0x274] sm:$0xf]
    %v1467 = vld [vmem:[%s1 + $0x278] sm:$0xf]
    %v1468 = vld [vmem:[%s1 + $0x27c] sm:$0xf]
    %v1469 = vld [vmem:[#allocation2] sm:$0xff]
    %v1470 = vld [vmem:[#allocation2 + $0x8] sm:$0xff]
    %v1471 = vld [vmem:[#allocation2 + $0x10] sm:$0xff]
    %v1472 = vld [vmem:[#allocation2 + $0x18] sm:$0xff]
    %v1473 = vld [vmem:[#allocation2 + $0x20] sm:$0xff]
    %v1474 = vld [vmem:[#allocation2 + $0x28] sm:$0xff]
    %v1476 = vunpack.c.l.b16 %v1257
    %v1477 = vunpack.c.h.b16 %v1257
    %v1478 = vpack.c.b16 %v1476, %v1476
    %v1479 = vpack.c.b16 %v1477, %v1477
    %v1481 = vshrl.u32 %v1302, 16
    %v1483 = vshll.u32 %v1302, 16
    %v1485 = vrot.slane %v1483, 1
    %v1486 = vor.u32 %v1481, %v1485
    %v1488 = vshll.u32 %v1304, 16
    %v1490 = vrot.slane %v1488, 1
    %v1491 = vsel %vm258, %v1486, %v1490
    %v1492 = vshrl.u32 %v1303, 16
    %v1494 = vshll.u32 %v1303, 16
    %v1496 = vrot.slane %v1494, 1
    %v1497 = vor.u32 %v1492, %v1496
    %v1498 = vshll.u32 %v1305, 16
    %v1500 = vrot.slane %v1498, 1
    %v1501 = vsel %vm258, %v1497, %v1500
    %v1502 = vshrl.u32 %v1304, 16
    %v1504 = vor.u32 %v1502, %v1490
    %v1506 = vshll.u32 %v1306, 16
    %v1508 = vrot.slane %v1506, 1
    %v1509 = vsel %vm258, %v1504, %v1508
    %v1510 = vshrl.u32 %v1305, 16
    %v1512 = vor.u32 %v1510, %v1500
    %v1513 = vshll.u32 %v1307, 16
    %v1515 = vrot.slane %v1513, 1
    %v1516 = vsel %vm258, %v1512, %v1515
    %v1517 = vshrl.u32 %v1306, 16
    %v1519 = vor.u32 %v1517, %v1508
    %v1521 = vshll.u32 %v1478, 16
    %v1523 = vrot.slane %v1521, 1
    %v1524 = vsel %vm258, %v1519, %v1523
    %v1525 = vshrl.u32 %v1307, 16
    %v1527 = vor.u32 %v1525, %v1515
    %v1529 = vshll.u32 %v1479, 16
    %v1531 = vrot.slane %v1529, 1
    %v1532 = vsel %vm258, %v1527, %v1531
    %v1556 = vunpack.c.l.b16 %v1449
    %v1557 = vunpack.c.l.b16 %v1450
    %v1558 = vunpack.c.l.b16 %v1451
    %v1559 = vunpack.c.l.b16 %v1452
    %v1560 = vunpack.c.l.b16 %v1453
    %v1561 = vunpack.c.l.b16 %v1454
    %v1562 = vunpack.c.l.b16 %v1455
    %v1563 = vunpack.c.l.b16 %v1456
    %v1564 = vunpack.c.l.b16 %v1457
    %v1565 = vunpack.c.l.b16 %v1458
    %v1566 = vunpack.c.l.b16 %v1459
    %v1567 = vunpack.c.l.b16 %v1460
    %v1568 = vunpack.c.l.b16 %v1461
    %v1569 = vunpack.c.l.b16 %v1462
    %v1570 = vunpack.c.l.b16 %v1463
    %v1571 = vunpack.c.l.b16 %v1464
    %v1572 = vunpack.c.l.b16 %v1465
    %v1573 = vunpack.c.l.b16 %v1466
    %v1574 = vunpack.c.l.b16 %v1467
    %v1575 = vunpack.c.l.b16 %v1468
    %v1576 = vpack.c.b16 %v1557, %v1556
    %v1577 = vpack.c.b16 %v1559, %v1558
    %v1578 = vpack.c.b16 %v1561, %v1560
    %v1579 = vpack.c.b16 %v1563, %v1562
    %v1580 = vpack.c.b16 %v1565, %v1564
    %v1581 = vpack.c.b16 %v1567, %v1566
    %v1582 = vpack.c.b16 %v1569, %v1568
    %v1583 = vpack.c.b16 %v1571, %v1570
    %v1584 = vpack.c.b16 %v1573, %v1572
    %v1585 = vpack.c.b16 %v1575, %v1574
    %v1597 = vsel %vm17, %v1501, 0
    %v1600 = vsel %vm17, %v1516, 0
    %v1603 = vsel %vm17, %v1532, 0
    %1605 = vmatprep.subr.bf16.mxu0 0
    %1606 = vmatpush1.bf16.msra.mxu0 %v1576
    %1607 = vmatprep.subr.bf16.mxu0 0
    %1608 = vmatpush1.bf16.msra.mxu0 %v1577
    %1609 = vmatprep.subr.bf16.mxu0 0
    %1610 = vmatpush1.bf16.msra.mxu0 %v1578
    %1611 = vmatprep.subr.bf16.mxu0 0
    %1612 = vmatpush1.bf16.msra.mxu0 %v1579
    %1613 = vmatprep.subr.bf16.mxu0 0
    %1614 = vmatpush1.bf16.msra.mxu0 %v1580
    %1615 = vmatprep.subr.bf16.mxu0 0
    %1616 = vmatpush1.bf16.msra.mxu0 %v1581
    %1617 = vmatprep.subr.bf16.mxu0 0
    %1618 = vmatpush1.bf16.msra.mxu0 %v1582
    %1619 = vmatprep.subr.bf16.mxu0 0
    %1620 = vmatpush1.bf16.msra.mxu0 %v1583
    %1621 = vmatprep.subr.bf16.mxu0 0
    %1622 = vmatpush1.bf16.msra.mxu0 %v1584
    %1623 = vmatprep.subr.bf16.mxu0 0
    %1624 = vmatpush1.bf16.msra.mxu0 %v1585
    %1625 = vmatprep.subr.bf16.mxu0 0
    %1626 = vmatpush1.bf16.msra.mxu0 0
    %1627 = vmatprep.subr.bf16.mxu0 0
    %1628 = vmatpush1.bf16.msra.mxu0 0
    %1629 = vmatprep.subr.bf16.mxu0 0
    %1630 = vmatpush1.bf16.msra.mxu0 0
    %1631 = vmatprep.subr.bf16.mxu0 0
    %1632 = vmatpush1.bf16.msra.mxu0 0
    %1633 = vmatprep.subr.bf16.mxu0 0
    %1634 = vmatpush1.bf16.msra.mxu0 0
    %1635 = vmatprep.subr.bf16.mxu0 0
    %1636 = vmatpush1.bf16.msra.mxu0 0
    %1637 = vmatprep.mubr.bf16.mxu0 %v1597
    %1638 = vmatmul.mubr.bf16.gmra.mrb[0].mxu0 %v1491
    %v1639 = vpop.f32.mrb[0].mxu0
    %v1640 = vadd.f32 0.0, %v1639
    %v1641 = vpop.f32.mrb[0].mxu0
    %v1642 = vpop.f32.mrb[0].mxu0
    %v1643 = vadd.f32 0.0, %v1642
    %v1644 = vpop.f32.mrb[0].mxu0
    %1645 = vmatprep.mubr.bf16.mxu0 %v1600
    %1646 = vmatmul.mubr.bf16.gmra.mrb[0].mxu0 %v1509
    %v1647 = vpop.f32.mrb[0].mxu0
    %v1648 = vadd.f32 0.0, %v1647
    %v1649 = vpop.f32.mrb[0].mxu0
    %v1650 = vpop.f32.mrb[0].mxu0
    %v1651 = vadd.f32 0.0, %v1650
    %v1652 = vpop.f32.mrb[0].mxu0
    %1653 = vmatprep.mubr.bf16.mxu0 %v1603
    %1654 = vmatmul.mubr.bf16.gmra.mrb[0].mxu0 %v1524
    %v1655 = vpop.f32.mrb[0].mxu0
    %v1656 = vadd.f32 0.0, %v1655
    %v1657 = vpop.f32.mrb[0].mxu0
    %v1658 = vpop.f32.mrb[0].mxu0
    %v1659 = vadd.f32 0.0, %v1658
    %v1660 = vpop.f32.mrb[0].mxu0
    %1661 = vdwg.mxu0
    %v1662 = vadd.f32 %v1469, %v1640
    %v1663 = vadd.f32 %v1470, %v1643
    %v1664 = vadd.f32 %v1471, %v1648
    %v1665 = vadd.f32 %v1472, %v1651
    %v1666 = vadd.f32 %v1473, %v1656
    %v1667 = vadd.f32 %v1474, %v1659
    %1668 = vst.msk [vmem:[#allocation2] sm:$0xff] %vm17, %v1662
    %1669 = vst.msk [vmem:[#allocation2 + $0x8] sm:$0xff] %vm17, %v1663
    %1670 = vst.msk [vmem:[#allocation2 + $0x10] sm:$0xff] %vm17, %v1664
    %1671 = vst.msk [vmem:[#allocation2 + $0x18] sm:$0xff] %vm17, %v1665
    %1672 = vst.msk [vmem:[#allocation2 + $0x20] sm:$0xff] %vm17, %v1666
    %1673 = vst.msk [vmem:[#allocation2 + $0x28] sm:$0xff] %vm17, %v1667
    %v1674 = vld [vmem:[%s1 + $0x280] sm:$0xf]
    %v1675 = vld [vmem:[%s1 + $0x284] sm:$0xf]
    %v1676 = vld [vmem:[%s1 + $0x288] sm:$0xf]
    %v1677 = vld [vmem:[%s1 + $0x28c] sm:$0xf]
    %v1678 = vld [vmem:[%s1 + $0x290] sm:$0xf]
    %v1679 = vld [vmem:[%s1 + $0x294] sm:$0xf]
    %v1680 = vld [vmem:[%s1 + $0x298] sm:$0xf]
    %v1681 = vld [vmem:[%s1 + $0x29c] sm:$0xf]
    %v1682 = vld [vmem:[%s1 + $0x2a0] sm:$0xf]
    %v1683 = vld [vmem:[%s1 + $0x2a4] sm:$0xf]
    %v1684 = vld [vmem:[%s1 + $0x2a8] sm:$0xf]
    %v1685 = vld [vmem:[%s1 + $0x2ac] sm:$0xf]
    %v1686 = vld [vmem:[%s1 + $0x2b0] sm:$0xf]
    %v1687 = vld [vmem:[%s1 + $0x2b4] sm:$0xf]
    %v1688 = vld [vmem:[%s1 + $0x2b8] sm:$0xf]
    %v1689 = vld [vmem:[%s1 + $0x2bc] sm:$0xf]
    %v1690 = vld [vmem:[%s1 + $0x2c0] sm:$0xf]
    %v1691 = vld [vmem:[%s1 + $0x2c4] sm:$0xf]
    %v1692 = vld [vmem:[%s1 + $0x2c8] sm:$0xf]
    %v1693 = vld [vmem:[%s1 + $0x2cc] sm:$0xf]
    %v1694 = vld [vmem:[#allocation2] sm:$0xff]
    %v1695 = vld [vmem:[#allocation2 + $0x8] sm:$0xff]
    %v1696 = vld [vmem:[#allocation2 + $0x10] sm:$0xff]
    %v1697 = vld [vmem:[#allocation2 + $0x18] sm:$0xff]
    %v1698 = vld [vmem:[#allocation2 + $0x20] sm:$0xff]
    %v1699 = vld [vmem:[#allocation2 + $0x28] sm:$0xff]
    %v1700 = vrot.slane %v1302, 1
    %v1701 = vrot.slane %v1304, 1
    %v1702 = vsel %vm479, %v1700, %v1701
    %v1703 = vrot.slane %v1303, 1
    %v1704 = vrot.slane %v1305, 1
    %v1705 = vsel %vm479, %v1703, %v1704
    %v1706 = vrot.slane %v1306, 1
    %v1707 = vsel %vm479, %v1701, %v1706
    %v1708 = vrot.slane %v1307, 1
    %v1709 = vsel %vm479, %v1704, %v1708
    %v1710 = vrot.slane %v1478, 1
    %v1711 = vsel %vm479, %v1706, %v1710
    %v1712 = vrot.slane %v1479, 1
    %v1713 = vsel %vm479, %v1708, %v1712
    %v1737 = vunpack.c.l.b16 %v1674
    %v1738 = vunpack.c.l.b16 %v1675
    %v1739 = vunpack.c.l.b16 %v1676
    %v1740 = vunpack.c.l.b16 %v1677
    %v1741 = vunpack.c.l.b16 %v1678
    %v1742 = vunpack.c.l.b16 %v1679
    %v1743 = vunpack.c.l.b16 %v1680
    %v1744 = vunpack.c.l.b16 %v1681
    %v1745 = vunpack.c.l.b16 %v1682
    %v1746 = vunpack.c.l.b16 %v1683
    %v1747 = vunpack.c.l.b16 %v1684
    %v1748 = vunpack.c.l.b16 %v1685
    %v1749 = vunpack.c.l.b16 %v1686
    %v1750 = vunpack.c.l.b16 %v1687
    %v1751 = vunpack.c.l.b16 %v1688
    %v1752 = vunpack.c.l.b16 %v1689
    %v1753 = vunpack.c.l.b16 %v1690
    %v1754 = vunpack.c.l.b16 %v1691
    %v1755 = vunpack.c.l.b16 %v1692
    %v1756 = vunpack.c.l.b16 %v1693
    %v1757 = vpack.c.b16 %v1738, %v1737
    %v1758 = vpack.c.b16 %v1740, %v1739
    %v1759 = vpack.c.b16 %v1742, %v1741
    %v1760 = vpack.c.b16 %v1744, %v1743
    %v1761 = vpack.c.b16 %v1746, %v1745
    %v1762 = vpack.c.b16 %v1748, %v1747
    %v1763 = vpack.c.b16 %v1750, %v1749
    %v1764 = vpack.c.b16 %v1752, %v1751
    %v1765 = vpack.c.b16 %v1754, %v1753
    %v1766 = vpack.c.b16 %v1756, %v1755
    %v1778 = vsel %vm17, %v1705, 0
    %v1781 = vsel %vm17, %v1709, 0
    %v1784 = vsel %vm17, %v1713, 0
    %1786 = vmatprep.subr.bf16.mxu0 0
    %1787 = vmatpush1.bf16.msra.mxu0 %v1757
    %1788 = vmatprep.subr.bf16.mxu0 0
    %1789 = vmatpush1.bf16.msra.mxu0 %v1758
    %1790 = vmatprep.subr.bf16.mxu0 0
    %1791 = vmatpush1.bf16.msra.mxu0 %v1759
    %1792 = vmatprep.subr.bf16.mxu0 0
    %1793 = vmatpush1.bf16.msra.mxu0 %v1760
    %1794 = vmatprep.subr.bf16.mxu0 0
    %1795 = vmatpush1.bf16.msra.mxu0 %v1761
    %1796 = vmatprep.subr.bf16.mxu0 0
    %1797 = vmatpush1.bf16.msra.mxu0 %v1762
    %1798 = vmatprep.subr.bf16.mxu0 0
    %1799 = vmatpush1.bf16.msra.mxu0 %v1763
    %1800 = vmatprep.subr.bf16.mxu0 0
    %1801 = vmatpush1.bf16.msra.mxu0 %v1764
    %1802 = vmatprep.subr.bf16.mxu0 0
    %1803 = vmatpush1.bf16.msra.mxu0 %v1765
    %1804 = vmatprep.subr.bf16.mxu0 0
    %1805 = vmatpush1.bf16.msra.mxu0 %v1766
    %1806 = vmatprep.subr.bf16.mxu0 0
    %1807 = vmatpush1.bf16.msra.mxu0 0
    %1808 = vmatprep.subr.bf16.mxu0 0
    %1809 = vmatpush1.bf16.msra.mxu0 0
    %1810 = vmatprep.subr.bf16.mxu0 0
    %1811 = vmatpush1.bf16.msra.mxu0 0
    %1812 = vmatprep.subr.bf16.mxu0 0
    %1813 = vmatpush1.bf16.msra.mxu0 0
    %1814 = vmatprep.subr.bf16.mxu0 0
    %1815 = vmatpush1.bf16.msra.mxu0 0
    %1816 = vmatprep.subr.bf16.mxu0 0
    %1817 = vmatpush1.bf16.msra.mxu0 0
    %1818 = vmatprep.mubr.bf16.mxu0 %v1778
    %1819 = vmatmul.mubr.bf16.gmra.mrb[0].mxu0 %v1702
    %v1820 = vpop.f32.mrb[0].mxu0
    %v1821 = vadd.f32 0.0, %v1820
    %v1822 = vpop.f32.mrb[0].mxu0
    %v1823 = vpop.f32.mrb[0].mxu0
    %v1824 = vadd.f32 0.0, %v1823
    %v1825 = vpop.f32.mrb[0].mxu0
    %1826 = vmatprep.mubr.bf16.mxu0 %v1781
    %1827 = vmatmul.mubr.bf16.gmra.mrb[0].mxu0 %v1707
    %v1828 = vpop.f32.mrb[0].mxu0
    %v1829 = vadd.f32 0.0, %v1828
    %v1830 = vpop.f32.mrb[0].mxu0
    %v1831 = vpop.f32.mrb[0].mxu0
    %v1832 = vadd.f32 0.0, %v1831
    %v1833 = vpop.f32.mrb[0].mxu0
    %1834 = vmatprep.mubr.bf16.mxu0 %v1784
    %1835 = vmatmul.mubr.bf16.gmra.mrb[0].mxu0 %v1711
    %v1836 = vpop.f32.mrb[0].mxu0
    %v1837 = vadd.f32 0.0, %v1836
    %v1838 = vpop.f32.mrb[0].mxu0
    %v1839 = vpop.f32.mrb[0].mxu0
    %v1840 = vadd.f32 0.0, %v1839
    %v1841 = vpop.f32.mrb[0].mxu0
    %1842 = vdwg.mxu0
    %v1843 = vadd.f32 %v1694, %v1821
    %v1844 = vadd.f32 %v1695, %v1824
    %v1845 = vadd.f32 %v1696, %v1829
    %v1846 = vadd.f32 %v1697, %v1832
    %v1847 = vadd.f32 %v1698, %v1837
    %v1848 = vadd.f32 %v1699, %v1840
    %1849 = vst.msk [vmem:[#allocation2] sm:$0xff] %vm17, %v1843
    %1850 = vst.msk [vmem:[#allocation2 + $0x8] sm:$0xff] %vm17, %v1844
    %1851 = vst.msk [vmem:[#allocation2 + $0x10] sm:$0xff] %vm17, %v1845
    %1852 = vst.msk [vmem:[#allocation2 + $0x18] sm:$0xff] %vm17, %v1846
    %1853 = vst.msk [vmem:[#allocation2 + $0x20] sm:$0xff] %vm17, %v1847
    %1854 = vst.msk [vmem:[#allocation2 + $0x28] sm:$0xff] %vm17, %v1848
    %v1855 = vld [vmem:[#allocation2] sm:$0xff]
    %v1856 = vld [vmem:[#allocation2 + $0x8] sm:$0xff]
    %v1857 = vld [vmem:[#allocation2 + $0x10] sm:$0xff]
    %v1858 = vld [vmem:[#allocation2 + $0x18] sm:$0xff]
    %v1859 = vld [vmem:[#allocation2 + $0x20] sm:$0xff]
    %v1860 = vld [vmem:[#allocation2 + $0x28] sm:$0xff]
    %v1861 = vld [vmem:[%s2] sm:$0x1]
    %v1863 = vlaneseq
    %v1864 = vshrl.u32 %v1863, 7
    %v1865 = vsub.s32 0, %v1864
    %v1866 = vrot.slane %v1861, %v1865
    %v1868 = vadd.f32 %v1855, %v1866
    %v1869 = vadd.f32 %v1856, %v1866
    %v1870 = vadd.f32 %v1857, %v1866
    %v1871 = vadd.f32 %v1858, %v1866
    %v1872 = vadd.f32 %v1859, %v1866
    %v1873 = vadd.f32 %v1860, %v1866
    %v1874 = vpack.c.bf16 %v1869, %v1868
    %v1875 = vpack.c.bf16 %v1871, %v1870
    %v1876 = vpack.c.bf16 %v1873, %v1872
    %v1880 = vunpack.c.l.b16 %v1874
    %v1881 = vunpack.c.h.b16 %v1874
    %v1882 = vunpack.c.l.b16 %v1875
    %v1883 = vunpack.c.h.b16 %v1875
    %v1884 = vunpack.c.l.b16 %v1876
    %v1885 = vunpack.c.h.b16 %v1876
    %v1886 = vpack.c.b16 %v1880, %v1880
    %v1887 = vpack.c.b16 %v1881, %v1881
    %v1888 = vpack.c.b16 %v1882, %v1882
    %v1889 = vpack.c.b16 %v1883, %v1883
    %v1890 = vpack.c.b16 %v1884, %v1884
    %v1891 = vpack.c.b16 %v1885, %v1885
    %vm1898 = vcmask 257024
    %1899 = vst.msk [vmem:[#allocation3] sm:$0xf] %vm1898, %v1886
    %1900 = vst.msk [vmem:[#allocation3 + $0x4] sm:$0xf] %vm1898, %v1887
    %1901 = vst.msk [vmem:[#allocation3 + $0x8] sm:$0xf] %vm1898, %v1888
    %1902 = vst.msk [vmem:[#allocation3 + $0xc] sm:$0xf] %vm1898, %v1889
    %1903 = vst.msk [vmem:[#allocation3 + $0x10] sm:$0xf] %vm1898, %v1890
    %1904 = vst.msk [vmem:[#allocation3 + $0x14] sm:$0xf] %vm1898, %v1891
    // Predicated region
    $region14: #{_lambda_.1} parent=1 // pred_check
      _
    $region15: #{_lambda_.1} parent=1 // pred_check_branch
      %1906 = sbr.rel (0) target = $region17
    $region16: #{_lambda_.1} parent=1 // pred_region
      %s1908 = ssub.s32 384, 384
      %1909 = vsyncadd [#allocation4], %s1908
      %s1910 = sshll.u32 [#allocation3], 4
      %s1911 = int_to_ptr.vmem [resolvable:$true] %s1910
      %1916 = dma.vmem_to_hbm [thread:$0]  %s1911, 384, %s3, [#allocation4], 64, 64, 4
    $region17: #{_lambda_.1} parent=1 // pred_fallthru
      _
    // Predicated region
    $region18: #{_lambda_.1} parent=1 // pred_check
      _
    $region19: #{_lambda_.1} parent=1 // pred_check_branch
      %1918 = sbr.rel (0) target = $region21
    $region20: #{_lambda_.1} parent=1 // pred_region
      %1919 = dma.done [#allocation4], 384
    $region21: #{_lambda_.1} parent=1 // pred_fallthru
      _
    %1920 = vsyncpa [#allocation4], 1

</llo_original>
